<compile_context>
chip_gen: v6e
topology: v6e:2x2x1
jax: 0.10.0
libtpu: 0.0.40
codegen_flags: <defaults>
</compile_context>

<pallas_src>
import math
import numpy as np
import jax
import jax.numpy as jnp
from jax.experimental import pallas as pl
from jax.experimental.pallas import tpu as pltpu

# Small shapes consistent with SelfTransFormer's constraints:
#   cin % 4 == 0 (conv groups), cout % group == 0 (GroupNorm), cout % 8 == 0 (heads)
B = 2
CIN = 32
COUT = 64
P = 16
CONV_GROUPS = 4          # fixed groups=4 in the nn.Conv1d
GN_GROUPS = 8            # GroupNorm groups (module default 32, scaled with cout)
HEADS = 8                # self.h = 8
EPS = 1e-5               # nn.GroupNorm default eps
SLOPE = 0.1              # LeakyReLU(negative_slope=0.1) per the module

C3 = 3 * COUT            # fused Q|K|V channel dim
CPG = COUT // GN_GROUPS  # channels per GroupNorm group
CH = COUT // HEADS       # channels per attention head
HP = HEADS * P           # lane-dense score width (= 128)
SCALE = 1.0 / math.sqrt(COUT / HEADS)   # 1/sqrt(c/h), c == COUT


def self_transformer_kernel(x_ref, w_ref, p_ref, m_ref, s_ref, h_ref, out_ref):
    """x_ref  : (B, CIN, P)     input, PyTorch NCL layout
       w_ref  : (CIN, 3*COUT)   block-diagonal fused Q|K|V conv weight
       p_ref  : (3, 3*COUT)     rows = [conv bias; GN gamma; GN beta]
                                (K's gamma/beta pre-scaled by 1/sqrt(c/h))
       m_ref  : (3C, 3C)        block-diag GroupNorm averaging matrix (1/(cpg*P))
       s_ref  : (H*P, H*P)      block-diag ones: segmented softmax-sum matrix
       h_ref  : (H*P, COUT)     head mask: 1 where lane-segment head == channel head
       out_ref: (B, COUT, P)    output, PyTorch NCL layout"""
    p = p_ref[...]                                            # (3, 3C)

    # ---- fused grouped 1x1 conv for Q,K,V: one MXU matmul + bias ----
    xt = jnp.transpose(x_ref[...], (0, 2, 1)).reshape(B * P, CIN)      # (B*P, CIN)
    y = jnp.dot(xt, w_ref[...], preferred_element_type=jnp.float32)
    y = (y + p[0:1]).reshape(B, P, C3)                                  # (B, P, 3C)

    # ---- fused GroupNorm (per batch, group) + LeakyReLU(0.1) ----
    # mean/var via ONE precomputed block-diagonal averaging matmul each.
    mavg = m_ref[...]                                                   # (3C, 3C)
    mean_c = jnp.dot(jnp.sum(y, axis=1), mavg,
                     preferred_element_type=jnp.float32)                # (B, 3C)
    yc = y - mean_c[:, None, :]
    var_c = jnp.dot(jnp.sum(yc * yc, axis=1), mavg,
                    preferred_element_type=jnp.float32)                 # (B, 3C)
    yn = yc * jax.lax.rsqrt(var_c + EPS)[:, None, :] * p[1:2] + p[2:3]
    yn = jnp.where(yn >= 0.0, yn, SLOPE * yn)                           # LeakyReLU

    # ---- all-heads attention, lane-dense (B, P, H*P) scores ----
    q = yn[:, :, 0:COUT]                      # (B, P, COUT)
    k = yn[:, :, COUT:2 * COUT]               # 1/sqrt(c/h) already folded in
    v = yn[:, :, 2 * COUT:3 * COUT]

    hm = h_ref[...]                           # (H*P, COUT)
    # sublane-replicate (cheap tile-stacking) + head mask: row h*P+j of *_bd
    # holds the head-h channel slice of row j.
    v_bd = jnp.broadcast_to(v[:, None, :, :], (B, HEADS, P, COUT)
                            ).reshape(B, HP, COUT) * hm                 # (B, H*P, COUT)
    q_bd = jnp.broadcast_to(q[:, None, :, :], (B, HEADS, P, COUT)
                            ).reshape(B, HP, COUT) * hm                 # (B, H*P, COUT)

    # s[b, i, h*P+j] = sum_{c in head h} K[b,i,c] * V[b,j,c]
    s = jnp.einsum('bic,bmc->bim', k, v_bd,
                   preferred_element_type=jnp.float32)                  # (B, P, H*P)

    # segmented softmax over each 16-lane head block; row max >= each segment max
    e = jnp.exp(s - jnp.max(s, axis=-1, keepdims=True))
    e2 = e.reshape(B * P, HP)
    denom = jnp.dot(e2, s_ref[...],
                    preferred_element_type=jnp.float32)                 # per-head sums
    r = pl.reciprocal(denom, approx=True)      # EUP
    r = r * (2.0 - denom * r)                  # one Newton step -> ~1e-6 rel err
    a = (e2 * r).reshape(B, P, HP)

    # out[b, i, c] = sum_j A[b, i, head(c)*P + j] * Q[b, j, c]
    out = jnp.einsum('bim,bmc->bic', a, q_bd,
                     preferred_element_type=jnp.float32)                # (B, P, COUT)
    out_ref[...] = jnp.transpose(out, (0, 2, 1))                        # (B, COUT, P)


# ----------------- one-time host-side parameter / constant packing -----------------
def pack_params(params_q, params_k, params_v):
    """Fuse the three grouped-conv + GroupNorm parameter sets (called ONCE)."""
    ci_g = CIN // CONV_GROUPS
    co_g = COUT // CONV_GROUPS

    def block_diag_t(w):          # (COUT, CIN//4) -> (CIN, COUT) block diagonal
        w = np.asarray(w, np.float32)
        wbd = np.zeros((CIN, COUT), np.float32)
        for g in range(CONV_GROUPS):
            wbd[g * ci_g:(g + 1) * ci_g, g * co_g:(g + 1) * co_g] = \
                w[g * co_g:(g + 1) * co_g, :].T
        return wbd

    w_all = np.concatenate([block_diag_t(params_q[0]),
                            block_diag_t(params_k[0]),
                            block_diag_t(params_v[0])], axis=1)          # (CIN, 3C)

    def flat(a):
        return np.asarray(a, np.float32).reshape(-1)

    bias = np.concatenate([flat(params_q[1]), flat(params_k[1]), flat(params_v[1])])
    # fold the 1/sqrt(c/h) attention scale into K's affine (LeakyReLU is
    # positively homogeneous, so LeakyReLU(s*x) == s*LeakyReLU(x) for s > 0)
    gamma = np.concatenate([flat(params_q[2]), SCALE * flat(params_k[2]), flat(params_v[2])])
    beta = np.concatenate([flat(params_q[3]), SCALE * flat(params_k[3]), flat(params_v[3])])
    p_all = np.stack([bias, gamma, beta], axis=0).astype(np.float32)     # (3, 3C)
    return jnp.asarray(w_all), jnp.asarray(p_all)


def make_constants():
    """Precomputed structural constants (built ONCE, never per call)."""
    c3 = np.arange(C3)
    m_gn = ((c3[:, None] // CPG) == (c3[None, :] // CPG)).astype(np.float32) \
        / float(CPG * P)                                                 # (3C, 3C)
    m = np.arange(HP)
    c = np.arange(COUT)
    s_sum = ((m[:, None] // P) == (m[None, :] // P)).astype(np.float32)  # (H*P, H*P)
    hmask = ((m[:, None] // P) == (c[None, :] // CH)).astype(np.float32) # (H*P, COUT)
    return jnp.asarray(m_gn), jnp.asarray(s_sum), jnp.asarray(hmask)


@jax.jit
def self_transformer_fwd(x, w_all, p_all, m_gn, s_sum, hmask):
    """x: (B, CIN, P) PyTorch NCL layout; returns (B, COUT, P).
    The whole forward is a single custom call: no wrapper pre/post kernels."""
    return pl.pallas_call(
        self_transformer_kernel,
        out_shape=jax.ShapeDtypeStruct((B, COUT, P), jnp.float32),
        # gridless: whole (tiny) arrays as VMEM-resident blocks, one pipeline step
        in_specs=[pl.BlockSpec(memory_space=pltpu.MemorySpace.VMEM)] * 6,
        out_specs=pl.BlockSpec(memory_space=pltpu.MemorySpace.VMEM),
    )(x, w_all, p_all, m_gn, s_sum, hmask)


# --------------------------- pure-JAX reference ---------------------------
def ref_forward(x, params_q, params_k, params_v):
    """Mirror of the PyTorch forward, for correctness checking."""
    def branch(p):
        w, b, gamma, beta = p
        ci_g = CIN // CONV_GROUPS
        co_g = COUT // CONV_GROUPS
        xg = x.reshape(B, CONV_GROUPS, ci_g, P)
        wg = w.reshape(CONV_GROUPS, co_g, ci_g)
        y = jnp.einsum('goc,bgcp->bgop', wg, xg).reshape(B, COUT, P) + b[None]
        yg = y.reshape(B, GN_GROUPS, -1)
        mean = yg.mean(-1, keepdims=True)
        var = ((yg - mean) ** 2).mean(-1, keepdims=True)
        yn = ((yg - mean) / jnp.sqrt(var + EPS)).reshape(B, COUT, P)
        yn = yn * gamma[None] + beta[None]
        return jnp.where(yn >= 0.0, yn, SLOPE * yn)

    Q = branch(params_q)
    K = branch(params_k)
    V = branch(params_v)
    Qh = Q.reshape(B, HEADS, CH, P)
    Kh = K.reshape(B, HEADS, CH, P)
    Vh = V.reshape(B, HEADS, CH, P)
    H = jnp.einsum('bhci,bhcj->bhij', Kh, Vh) / math.sqrt(COUT / HEADS)
    H = jax.nn.softmax(H, axis=-1)
    out = jnp.einsum('bhij,bhcj->bhci', H, Qh)
    return out.reshape(B, COUT, P)


def init_branch_params(key):
    k1, k2, k3, k4 = jax.random.split(key, 4)
    w = 0.1 * jax.random.normal(k1, (COUT, CIN // CONV_GROUPS), jnp.float32)
    b = 0.1 * jax.random.normal(k2, (COUT, 1), jnp.float32)
    gamma = 1.0 + 0.1 * jax.random.normal(k3, (COUT, 1), jnp.float32)
    beta = 0.1 * jax.random.normal(k4, (COUT, 1), jnp.float32)
    return (w, b, gamma, beta)


if __name__ == "__main__":
    key = jax.random.PRNGKey(0)
    kx, kq, kk, kv = jax.random.split(key, 4)
    x = jax.random.normal(kx, (B, CIN, P), jnp.float32)
    params_q = init_branch_params(kq)
    params_k = init_branch_params(kk)
    params_v = init_branch_params(kv)

    # One-time packing, hoisted out of the per-call hot path.
    w_all, p_all = pack_params(params_q, params_k, params_v)
    m_gn, s_sum, hmask = make_constants()

    out = jax.block_until_ready(
        self_transformer_fwd(x, w_all, p_all, m_gn, s_sum, hmask))
    ref = jax.block_until_ready(ref_forward(x, params_q, params_k, params_v))

    assert out.shape == (B, COUT, P)
    err = float(jnp.max(jnp.abs(out - ref)))
    assert jnp.allclose(out, ref, rtol=1e-4, atol=1e-4), f"max abs err = {err}"
    print("KERNEL_OK")
</pallas_src>

<mosaic_0001>
module attributes {stable_mosaic.version = 11 : i64} {
  func.func @self_transformer_kernel(%arg0: memref<2x32x16xf32, #tpu.memory_space<vmem>>, %arg1: memref<32x192xf32, #tpu.memory_space<vmem>>, %arg2: memref<3x192xf32, #tpu.memory_space<vmem>>, %arg3: memref<192x192xf32, #tpu.memory_space<vmem>>, %arg4: memref<128x128xf32, #tpu.memory_space<vmem>>, %arg5: memref<128x64xf32, #tpu.memory_space<vmem>>, %arg6: memref<2x64x16xf32, #tpu.memory_space<vmem>>) attributes {dimension_semantics = [], scalar_prefetch = 0 : i64, scratch_operands = 0 : i64, tpu.core_type = #tpu.core_type<tc>} {
    %c0 = arith.constant 0 : index
    %c0_0 = arith.constant 0 : index
    %0 = vector.load %arg2[%c0, %c0_0] : memref<3x192xf32, #tpu.memory_space<vmem>>, vector<3x192xf32>
    %c0_1 = arith.constant 0 : index
    %c0_2 = arith.constant 0 : index
    %c0_3 = arith.constant 0 : index
    %1 = vector.load %arg0[%c0_1, %c0_2, %c0_3] : memref<2x32x16xf32, #tpu.memory_space<vmem>>, vector<2x32x16xf32>
    %2 = tpu.transpose %1, [0, 2, 1] : vector<2x32x16xf32> -> vector<2x16x32xf32>
    %3 = vector.shape_cast %2 : vector<2x16x32xf32> to vector<32x32xf32>
    %c0_4 = arith.constant 0 : index
    %c0_5 = arith.constant 0 : index
    %4 = vector.load %arg1[%c0_4, %c0_5] : memref<32x192xf32, #tpu.memory_space<vmem>>, vector<32x192xf32>
    %cst = arith.constant dense<0.000000e+00> : vector<32x192xf32>
    %5 = tpu.matmul %3, %4, %cst {dimension_numbers = #tpu.dot_dimension_numbers<[1], [0], [0], [1], [0, 0, 1, 1], [], []>} : vector<32x32xf32>, vector<32x192xf32>, vector<32x192xf32> -> vector<32x192xf32>
    %6 = vector.extract_strided_slice %0 {offsets = [0, 0], sizes = [1, 192], strides = [1, 1]} : vector<3x192xf32> to vector<1x192xf32>
    %7 = vector.broadcast %6 : vector<1x192xf32> to vector<32x192xf32>
    %8 = arith.addf %5, %7 : vector<32x192xf32>
    %9 = vector.shape_cast %8 : vector<32x192xf32> to vector<2x16x192xf32>
    %c0_6 = arith.constant 0 : index
    %c0_7 = arith.constant 0 : index
    %10 = vector.load %arg3[%c0_6, %c0_7] : memref<192x192xf32, #tpu.memory_space<vmem>>, vector<192x192xf32>
    %cst_8 = arith.constant dense<0.000000e+00> : vector<2x192xf32>
    %11 = vector.multi_reduction <add>, %9, %cst_8 [1] : vector<2x16x192xf32> to vector<2x192xf32>
    %cst_9 = arith.constant dense<0.000000e+00> : vector<2x192xf32>
    %12 = tpu.matmul %11, %10, %cst_9 {dimension_numbers = #tpu.dot_dimension_numbers<[1], [0], [0], [1], [0, 0, 1, 1], [], []>} : vector<2x192xf32>, vector<192x192xf32>, vector<2x192xf32> -> vector<2x192xf32>
    %13 = vector.shape_cast %12 : vector<2x192xf32> to vector<2x1x192xf32>
    %14 = vector.broadcast %13 : vector<2x1x192xf32> to vector<2x16x192xf32>
    %15 = arith.subf %9, %14 : vector<2x16x192xf32>
    %16 = arith.mulf %15, %15 : vector<2x16x192xf32>
    %cst_10 = arith.constant dense<0.000000e+00> : vector<2x192xf32>
    %17 = vector.multi_reduction <add>, %16, %cst_10 [1] : vector<2x16x192xf32> to vector<2x192xf32>
    %cst_11 = arith.constant dense<0.000000e+00> : vector<2x192xf32>
    %18 = tpu.matmul %17, %10, %cst_11 {dimension_numbers = #tpu.dot_dimension_numbers<[1], [0], [0], [1], [0, 0, 1, 1], [], []>} : vector<2x192xf32>, vector<192x192xf32>, vector<2x192xf32> -> vector<2x192xf32>
    %cst_12 = arith.constant 9.99999974E-6 : f32
    %19 = vector.broadcast %cst_12 : f32 to vector<2x192xf32>
    %20 = arith.addf %18, %19 : vector<2x192xf32>
    %21 = math.rsqrt %20 : vector<2x192xf32>
    %22 = vector.shape_cast %21 : vector<2x192xf32> to vector<2x1x192xf32>
    %23 = vector.broadcast %22 : vector<2x1x192xf32> to vector<2x16x192xf32>
    %24 = arith.mulf %15, %23 : vector<2x16x192xf32>
    %25 = vector.extract_strided_slice %0 {offsets = [1, 0], sizes = [1, 192], strides = [1, 1]} : vector<3x192xf32> to vector<1x192xf32>
    %26 = vector.shape_cast %25 : vector<1x192xf32> to vector<1x1x192xf32>
    %27 = vector.broadcast %26 : vector<1x1x192xf32> to vector<2x16x192xf32>
    %28 = arith.mulf %24, %27 : vector<2x16x192xf32>
    %29 = vector.extract_strided_slice %0 {offsets = [2, 0], sizes = [1, 192], strides = [1, 1]} : vector<3x192xf32> to vector<1x192xf32>
    %30 = vector.shape_cast %29 : vector<1x192xf32> to vector<1x1x192xf32>
    %31 = vector.broadcast %30 : vector<1x1x192xf32> to vector<2x16x192xf32>
    %32 = arith.addf %28, %31 : vector<2x16x192xf32>
    %cst_13 = arith.constant 0.000000e+00 : f32
    %33 = vector.broadcast %cst_13 : f32 to vector<2x16x192xf32>
    %34 = arith.cmpf oge, %32, %33 : vector<2x16x192xf32>
    %cst_14 = arith.constant 1.000000e-01 : f32
    %35 = vector.broadcast %cst_14 : f32 to vector<2x16x192xf32>
    %36 = arith.mulf %35, %32 : vector<2x16x192xf32>
    %37 = arith.select %34, %32, %36 : vector<2x16x192xi1>, vector<2x16x192xf32>
    %38 = vector.extract_strided_slice %37 {offsets = [0, 0, 0], sizes = [2, 16, 64], strides = [1, 1, 1]} : vector<2x16x192xf32> to vector<2x16x64xf32>
    %39 = vector.extract_strided_slice %37 {offsets = [0, 0, 64], sizes = [2, 16, 64], strides = [1, 1, 1]} : vector<2x16x192xf32> to vector<2x16x64xf32>
    %40 = vector.extract_strided_slice %37 {offsets = [0, 0, 128], sizes = [2, 16, 64], strides = [1, 1, 1]} : vector<2x16x192xf32> to vector<2x16x64xf32>
    %c0_15 = arith.constant 0 : index
    %c0_16 = arith.constant 0 : index
    %41 = vector.load %arg5[%c0_15, %c0_16] : memref<128x64xf32, #tpu.memory_space<vmem>>, vector<128x64xf32>
    %42 = vector.shape_cast %40 : vector<2x16x64xf32> to vector<2x1x16x64xf32>
    %43 = vector.shape_cast %42 : vector<2x1x16x64xf32> to vector<2x1x16x64xf32>
    %44 = vector.broadcast %43 : vector<2x1x16x64xf32> to vector<2x8x16x64xf32>
    %45 = vector.shape_cast %44 : vector<2x8x16x64xf32> to vector<2x128x64xf32>
    %46 = vector.shape_cast %41 : vector<128x64xf32> to vector<1x128x64xf32>
    %47 = vector.broadcast %46 : vector<1x128x64xf32> to vector<2x128x64xf32>
    %48 = arith.mulf %45, %47 : vector<2x128x64xf32>
    %49 = vector.shape_cast %38 : vector<2x16x64xf32> to vector<2x1x16x64xf32>
    %50 = vector.shape_cast %49 : vector<2x1x16x64xf32> to vector<2x1x16x64xf32>
    %51 = vector.broadcast %50 : vector<2x1x16x64xf32> to vector<2x8x16x64xf32>
    %52 = vector.shape_cast %51 : vector<2x8x16x64xf32> to vector<2x128x64xf32>
    %53 = vector.shape_cast %41 : vector<128x64xf32> to vector<1x128x64xf32>
    %54 = vector.broadcast %53 : vector<1x128x64xf32> to vector<2x128x64xf32>
    %55 = arith.mulf %52, %54 : vector<2x128x64xf32>
    "tpu.trace_start"() <{level = 10 : i32, message = "bic,bmc->bim"}> : () -> ()
    %cst_17 = arith.constant dense<0.000000e+00> : vector<2x16x128xf32>
    %56 = tpu.matmul %39, %48, %cst_17 {dimension_numbers = #tpu.dot_dimension_numbers<[2], [2], [1], [1], [0, 0, 0, 1, 1, 1], [0], [0]>} : vector<2x16x64xf32>, vector<2x128x64xf32>, vector<2x16x128xf32> -> vector<2x16x128xf32>
    "tpu.trace_stop"() : () -> ()
    %cst_18 = arith.constant dense<0xFF800000> : vector<2x16xf32>
    %57 = vector.multi_reduction <maximumf>, %56, %cst_18 [2] : vector<2x16x128xf32> to vector<2x16xf32>
    %58 = vector.shape_cast %57 : vector<2x16xf32> to vector<2x16x1xf32>
    %59 = vector.broadcast %58 : vector<2x16x1xf32> to vector<2x16x128xf32>
    %60 = arith.subf %56, %59 : vector<2x16x128xf32>
    %61 = math.exp %60 : vector<2x16x128xf32>
    %62 = vector.shape_cast %61 : vector<2x16x128xf32> to vector<32x128xf32>
    %c0_19 = arith.constant 0 : index
    %c0_20 = arith.constant 0 : index
    %63 = vector.load %arg4[%c0_19, %c0_20] : memref<128x128xf32, #tpu.memory_space<vmem>>, vector<128x128xf32>
    %cst_21 = arith.constant dense<0.000000e+00> : vector<32x128xf32>
    %64 = tpu.matmul %62, %63, %cst_21 {dimension_numbers = #tpu.dot_dimension_numbers<[1], [0], [0], [1], [0, 0, 1, 1], [], []>} : vector<32x128xf32>, vector<128x128xf32>, vector<32x128xf32> -> vector<32x128xf32>
    %65 = tpu.reciprocal %64 {approx = true} : vector<32x128xf32> -> vector<32x128xf32>
    %66 = arith.mulf %64, %65 : vector<32x128xf32>
    %cst_22 = arith.constant 2.000000e+00 : f32
    %67 = vector.broadcast %cst_22 : f32 to vector<32x128xf32>
    %68 = arith.subf %67, %66 : vector<32x128xf32>
    %69 = arith.mulf %65, %68 : vector<32x128xf32>
    %70 = arith.mulf %62, %69 : vector<32x128xf32>
    %71 = vector.shape_cast %70 : vector<32x128xf32> to vector<2x16x128xf32>
    "tpu.trace_start"() <{level = 10 : i32, message = "bim,bmc->bic"}> : () -> ()
    %cst_23 = arith.constant dense<0.000000e+00> : vector<2x16x64xf32>
    %72 = tpu.matmul %71, %55, %cst_23 {dimension_numbers = #tpu.dot_dimension_numbers<[2], [1], [1], [2], [0, 0, 0, 1, 1, 2], [0], [0]>} : vector<2x16x128xf32>, vector<2x128x64xf32>, vector<2x16x64xf32> -> vector<2x16x64xf32>
    "tpu.trace_stop"() : () -> ()
    %73 = tpu.transpose %72, [0, 2, 1] : vector<2x16x64xf32> -> vector<2x64x16xf32>
    %c0_24 = arith.constant 0 : index
    %c0_25 = arith.constant 0 : index
    %c0_26 = arith.constant 0 : index
    %74 = vector.load %arg6[%c0_24, %c0_25, %c0_26] : memref<2x64x16xf32, #tpu.memory_space<vmem>>, vector<2x64x16xf32>
    tpu.vector_store %arg6[%c0_24, %c0_25, %c0_26], %73 {strides = array<i32>} : memref<2x64x16xf32, #tpu.memory_space<vmem>>, vector<2x64x16xf32>,
    return
  }
}

</mosaic_0001>

<llo_original>
// kernel: self_transformer_fwd.1
$region0: #{self_transformer_fwd.1}
  #allocation0 [shape = 'u32[]', space=smem, size = 0x4, offset = 0x4, fixed_abs, tag = 'smem constant byte address 0x4 - core index']
  #allocation1 [shape = 'u32[144,128]{1,0:T(1,128)}', space=vmem, size = 0x12000, scoped, tag = 'internal scratch']
  %s0 = inlined_call_operand.vmem [shape: f32[2,32,16], index: 0, kind: input, shape index: {}]
  %s1 = inlined_call_operand.vmem [shape: f32[32,192], index: 1, kind: input, shape index: {}]
  %s2 = inlined_call_operand.vmem [shape: f32[3,192], index: 2, kind: input, shape index: {}]
  %s3 = inlined_call_operand.hbm [shape: f32[192,192], index: 3, kind: input, shape index: {}]
  %s4 = inlined_call_operand.vmem [shape: f32[128,128], index: 4, kind: input, shape index: {}]
  %s5 = inlined_call_operand.vmem [shape: f32[128,64], index: 5, kind: input, shape index: {}]
  %s6 = inlined_call_operand.vmem [shape: f32[2,64,16], index: 6, kind: output, shape index: {}]
  %s7 = sld [smem:[#allocation0]]
  $region38: #{self_transformer_fwd.1} parent=0
    _
  %s9 = ssub.s32 1, %s7
  %s10 = scalar_select 0, %s9, %s7
  $region1: #{self_transformer_fwd.1} parent=0
    #allocation2 [shape = 'u8[196608]{0}', space=vmem, size = 0x30000, scoped, tag = 'input window, operand 3, single buffered']
    #allocation3 [shape = 's32[1]{0}', space=sflag, size = 0x4, scoped, tag = 'scoped memory for self_transformer_fwd.1']
    %11 = vsyncpa [#allocation3], 0
    // Predicated region
    $region2: #{self_transformer_fwd.1} parent=1 // pred_check
      _
    $region3: #{self_transformer_fwd.1} parent=1 // pred_check_branch
      %13 = sbr.rel (0) target = $region5
    $region4: #{self_transformer_fwd.1} parent=1 // pred_region
      _
    $region5: #{self_transformer_fwd.1} parent=1 // pred_fallthru
      _
    // Predicated region
    $region6: #{self_transformer_fwd.1} parent=1 // pred_check
      _
    $region7: #{self_transformer_fwd.1} parent=1 // pred_check_branch
      %15 = sbr.rel (0) target = $region9
    $region8: #{self_transformer_fwd.1} parent=1 // pred_region
      _
    $region9: #{self_transformer_fwd.1} parent=1 // pred_fallthru
      _
    // Predicated region
    $region10: #{self_transformer_fwd.1} parent=1 // pred_check
      _
    $region11: #{self_transformer_fwd.1} parent=1 // pred_check_branch
      %17 = sbr.rel (0) target = $region13
    $region12: #{self_transformer_fwd.1} parent=1 // pred_region
      _
    $region13: #{self_transformer_fwd.1} parent=1 // pred_fallthru
      _
    // Predicated region
    $region14: #{self_transformer_fwd.1} parent=1 // pred_check
      _
    $region15: #{self_transformer_fwd.1} parent=1 // pred_check_branch
      %19 = sbr.rel (0) target = $region17
    $region16: #{self_transformer_fwd.1} parent=1 // pred_region
      %s21 = ssub.s32 6144, 6144
      %22 = vsyncadd [#allocation3], %s21
      %s23 = sshll.u32 [#allocation2], 4
      %s24 = int_to_ptr.vmem [resolvable:$true] %s23
      %29 = dma.hbm_to_vmem [thread:$0]  %s3, 6144, %s24, [#allocation3], 256, 256, 16
    $region17: #{self_transformer_fwd.1} parent=1 // pred_fallthru
      _
    // Predicated region
    $region18: #{self_transformer_fwd.1} parent=1 // pred_check
      _
    $region19: #{self_transformer_fwd.1} parent=1 // pred_check_branch
      %31 = sbr.rel (0) target = $region21
    $region20: #{self_transformer_fwd.1} parent=1 // pred_region
      _
    $region21: #{self_transformer_fwd.1} parent=1 // pred_fallthru
      _
    // Predicated region
    $region22: #{self_transformer_fwd.1} parent=1 // pred_check
      _
    $region23: #{self_transformer_fwd.1} parent=1 // pred_check_branch
      %33 = sbr.rel (0) target = $region25
    $region24: #{self_transformer_fwd.1} parent=1 // pred_region
      _
    $region25: #{self_transformer_fwd.1} parent=1 // pred_fallthru
      _
    // Predicated region
    $region26: #{self_transformer_fwd.1} parent=1 // pred_check
      _
    $region27: #{self_transformer_fwd.1} parent=1 // pred_check_branch
      %35 = sbr.rel (0) target = $region29
    $region28: #{self_transformer_fwd.1} parent=1 // pred_region
      %36 = dma.done [#allocation3], 6144
    $region29: #{self_transformer_fwd.1} parent=1 // pred_fallthru
      _
    %v37 = vld [vmem:[%s2] sm:$0x77]
    %v38 = vld [vmem:[%s0] sm:$0xff]
    %v39 = vld [vmem:[%s0 + $0x8] sm:$0xff]
    %v40 = vld [vmem:[%s0 + $0x10] sm:$0xff]
    %v41 = vld [vmem:[%s0 + $0x18] sm:$0xff]
    %v42 = vld [vmem:[%s0 + $0x20] sm:$0xff]
    %v43 = vld [vmem:[%s0 + $0x28] sm:$0xff]
    %v44 = vld [vmem:[%s0 + $0x30] sm:$0xff]
    %v45 = vld [vmem:[%s0 + $0x38] sm:$0xff]
    %46 = vxpose.xlu0.b32.start [1/16] %v38, 128
    %47 = vxpose.xlu0.b32.cont [2/16] %v39, 128
    %48 = vxpose.xlu0.b32.cont [3/16] %v40, 128
    %49 = vxpose.xlu0.b32.cont [4/16] %v41, 128
    %50 = vxpose.xlu0.b32.cont [5/16] 0.0, 128
    %51 = vxpose.xlu0.b32.cont [6/16] 0.0, 128
    %52 = vxpose.xlu0.b32.cont [7/16] 0.0, 128
    %53 = vxpose.xlu0.b32.cont [8/16] 0.0, 128
    %54 = vxpose.xlu0.b32.cont [9/16] 0.0, 128
    %55 = vxpose.xlu0.b32.cont [10/16] 0.0, 128
    %56 = vxpose.xlu0.b32.cont [11/16] 0.0, 128
    %57 = vxpose.xlu0.b32.cont [12/16] 0.0, 128
    %58 = vxpose.xlu0.b32.cont [13/16] 0.0, 128
    %59 = vxpose.xlu0.b32.cont [14/16] 0.0, 128
    %60 = vxpose.xlu0.b32.cont [15/16] 0.0, 128
    %61 = vxpose.xlu0.b32.end [16/16] 0.0, 128
    %v62 = vpop.trf.xlu0
    %v63 = vpop.trf.xlu0
    %v64 = vpop.trf.xlu0
    %v65 = vpop.trf.xlu0
    %v66 = vpop.trf.xlu0
    %v67 = vpop.trf.xlu0
    %v68 = vpop.trf.xlu0
    %v69 = vpop.trf.xlu0
    %v70 = vpop.trf.xlu0
    %v71 = vpop.trf.xlu0
    %v72 = vpop.trf.xlu0
    %v73 = vpop.trf.xlu0
    %v74 = vpop.trf.xlu0
    %v75 = vpop.trf.xlu0
    %v76 = vpop.trf.xlu0
    %v77 = vpop.trf.xlu0
    %78 = vxpose.xlu0.b32.start [1/16] %v42, 128
    %79 = vxpose.xlu0.b32.cont [2/16] %v43, 128
    %80 = vxpose.xlu0.b32.cont [3/16] %v44, 128
    %81 = vxpose.xlu0.b32.cont [4/16] %v45, 128
    %82 = vxpose.xlu0.b32.cont [5/16] 0.0, 128
    %83 = vxpose.xlu0.b32.cont [6/16] 0.0, 128
    %84 = vxpose.xlu0.b32.cont [7/16] 0.0, 128
    %85 = vxpose.xlu0.b32.cont [8/16] 0.0, 128
    %86 = vxpose.xlu0.b32.cont [9/16] 0.0, 128
    %87 = vxpose.xlu0.b32.cont [10/16] 0.0, 128
    %88 = vxpose.xlu0.b32.cont [11/16] 0.0, 128
    %89 = vxpose.xlu0.b32.cont [12/16] 0.0, 128
    %90 = vxpose.xlu0.b32.cont [13/16] 0.0, 128
    %91 = vxpose.xlu0.b32.cont [14/16] 0.0, 128
    %92 = vxpose.xlu0.b32.cont [15/16] 0.0, 128
    %93 = vxpose.xlu0.b32.end [16/16] 0.0, 128
    %v94 = vpop.trf.xlu0
    %v95 = vpop.trf.xlu0
    %v96 = vpop.trf.xlu0
    %v97 = vpop.trf.xlu0
    %v98 = vpop.trf.xlu0
    %v99 = vpop.trf.xlu0
    %v100 = vpop.trf.xlu0
    %v101 = vpop.trf.xlu0
    %v102 = vpop.trf.xlu0
    %v103 = vpop.trf.xlu0
    %v104 = vpop.trf.xlu0
    %v105 = vpop.trf.xlu0
    %v106 = vpop.trf.xlu0
    %v107 = vpop.trf.xlu0
    %v108 = vpop.trf.xlu0
    %v109 = vpop.trf.xlu0
    %v110 = vld [vmem:[%s1] sm:$0xff]
    %v111 = vld [vmem:[%s1 + $0x8] sm:$0xff]
    %v112 = vld [vmem:[%s1 + $0x10] sm:$0xff]
    %v113 = vld [vmem:[%s1 + $0x18] sm:$0xff]
    %v114 = vld [vmem:[%s1 + $0x20] sm:$0xff]
    %v115 = vld [vmem:[%s1 + $0x28] sm:$0xff]
    %v116 = vld [vmem:[%s1 + $0x30] sm:$0xff]
    %v117 = vld [vmem:[%s1 + $0x38] sm:$0xff]
    %v119 = vlaneseq
    %v120 = vshrl.u32 %v119, 7
    %v121 = vsub.s32 0, %v120
    %v122 = vrot.slane %v37, %v121
    %v123 = vlaneseq
    %v124 = vshrl.u32 %v123, 7
    %v125 = vsub.s32 4, %v124
    %v126 = vrot.slane %v37, %v125
    %v129 = vlaneseq
    %v130 = vshrl.u32 %v129, 7
    %v131 = vsub.s32 0, %v130
    %v132 = vrot.slane %v122, %v131
    %v133 = vlaneseq
    %v134 = vshrl.u32 %v133, 7
    %v135 = vsub.s32 0, %v134
    %v136 = vrot.slane %v126, %v135
    %vm137 = vcmask 261120
    %v139 = vsel %vm137, %v62, 0
    %v142 = vsel %vm137, %v63, 0
    %v145 = vsel %vm137, %v94, 0
    %v148 = vsel %vm137, %v95, 0
    %150 = vmatprep.subr.mxu0 0.0
    %151 = vmatpush1.msra.mxu0 0.0
    %152 = vmatprep.subr.mxu0 0.0
    %153 = vmatpush1.msra.mxu0 0.0
    %154 = vmatprep.subr.mxu0 0.0
    %155 = vmatpush1.msra.mxu0 0.0
    %156 = vmatprep.subr.mxu0 0.0
    %157 = vmatpush1.msra.mxu0 0.0
    %158 = vmatprep.subr.mxu0 0.0
    %159 = vmatpush1.msra.mxu0 0.0
    %160 = vmatprep.subr.mxu0 0.0
    %161 = vmatpush1.msra.mxu0 0.0
    %162 = vmatprep.subr.mxu0 0.0
    %163 = vmatpush1.msra.mxu0 0.0
    %164 = vmatprep.subr.mxu0 0.0
    %165 = vmatpush1.msra.mxu0 0.0
    %166 = vmatprep.subr.mxu0 0.0
    %167 = vmatpush1.msra.mxu0 0.0
    %168 = vmatprep.subr.mxu0 0.0
    %169 = vmatpush1.msra.mxu0 0.0
    %170 = vmatprep.subr.mxu0 0.0
    %171 = vmatpush1.msra.mxu0 0.0
    %172 = vmatprep.subr.mxu0 0.0
    %173 = vmatpush1.msra.mxu0 0.0
    %174 = vmatprep.subr.mxu0 %v117
    %175 = vmatpush1.msra.mxu0 %v116
    %176 = vmatprep.subr.mxu0 %v115
    %177 = vmatpush1.msra.mxu0 %v114
    %178 = vmatprep.subr.mxu0 %v113
    %179 = vmatpush1.msra.mxu0 %v112
    %180 = vmatprep.subr.mxu0 %v111
    %181 = vmatpush1.msra.mxu0 %v110
    %182 = vmatprep.subr.mxu0 0.0
    %183 = vmatpush2.msra.mxu0 0.0
    %184 = vmatprep.subr.mxu0 0.0
    %185 = vmatpush2.msra.mxu0 0.0
    %186 = vmatprep.subr.mxu0 0.0
    %187 = vmatpush2.msra.mxu0 0.0
    %188 = vmatprep.subr.mxu0 0.0
    %189 = vmatpush2.msra.mxu0 0.0
    %190 = vmatprep.subr.mxu0 0.0
    %191 = vmatpush2.msra.mxu0 0.0
    %192 = vmatprep.subr.mxu0 0.0
    %193 = vmatpush2.msra.mxu0 0.0
    %194 = vmatprep.subr.mxu0 0.0
    %195 = vmatpush2.msra.mxu0 0.0
    %196 = vmatprep.subr.mxu0 0.0
    %197 = vmatpush2.msra.mxu0 0.0
    %198 = vmatprep.subr.mxu0 0.0
    %199 = vmatpush2.msra.mxu0 0.0
    %200 = vmatprep.subr.mxu0 0.0
    %201 = vmatpush2.msra.mxu0 0.0
    %202 = vmatprep.subr.mxu0 0.0
    %203 = vmatpush2.msra.mxu0 0.0
    %204 = vmatprep.subr.mxu0 0.0
    %205 = vmatpush2.msra.mxu0 0.0
    %206 = vmatprep.subr.mxu0 0.0
    %207 = vmatpush2.msra.mxu0 0.0
    %208 = vmatprep.subr.mxu0 0.0
    %209 = vmatpush2.msra.mxu0 0.0
    %210 = vmatprep.subr.mxu0 0.0
    %211 = vmatpush2.msra.mxu0 0.0
    %212 = vmatprep.subr.mxu0 0.0
    %213 = vmatpush2.msra.mxu0 0.0
    %214 = vmatprep.mubr.f32.mxu0 0.0
    %215 = vmatmul.mubr.f32.gmra.mxu0 %v139
    %v216 = vpop.f32.mrf.mxu0
    %v217 = vadd.f32 %v132, %v216
    %v218 = vpop.f32.mrf.mxu0
    %v219 = vadd.f32 %v136, %v218
    %220 = vmatprep.mubr.f32.mxu0 0.0
    %221 = vmatmul.mubr.f32.gmra.mxu0 %v142
    %v222 = vpop.f32.mrf.mxu0
    %v223 = vadd.f32 %v132, %v222
    %v224 = vpop.f32.mrf.mxu0
    %v225 = vadd.f32 %v136, %v224
    %226 = vmatprep.mubr.f32.mxu0 0.0
    %227 = vmatmul.mubr.f32.gmra.mxu0 %v145
    %v228 = vpop.f32.mrf.mxu0
    %v229 = vadd.f32 %v132, %v228
    %v230 = vpop.f32.mrf.mxu0
    %v231 = vadd.f32 %v136, %v230
    %232 = vmatprep.mubr.f32.mxu0 0.0
    %233 = vmatmul.mubr.f32.gmra.mxu0 %v148
    %v234 = vpop.f32.mrf.mxu0
    %v235 = vadd.f32 %v132, %v234
    %v236 = vpop.f32.mrf.mxu0
    %v237 = vadd.f32 %v136, %v236
    %238 = vdwg.mxu0
    %v239 = vld [vmem:[#allocation2] sm:$0xff]
    %v240 = vld [vmem:[#allocation2 + $0x8] sm:$0xff]
    %v241 = vld [vmem:[#allocation2 + $0x10] sm:$0xff]
    %v242 = vld [vmem:[#allocation2 + $0x18] sm:$0xff]
    %v243 = vld [vmem:[#allocation2 + $0x20] sm:$0xff]
    %v244 = vld [vmem:[#allocation2 + $0x28] sm:$0xff]
    %v245 = vld [vmem:[#allocation2 + $0x30] sm:$0xff]
    %v246 = vld [vmem:[#allocation2 + $0x38] sm:$0xff]
    %v247 = vld [vmem:[#allocation2 + $0x40] sm:$0xff]
    %v248 = vld [vmem:[#allocation2 + $0x48] sm:$0xff]
    %v249 = vld [vmem:[#allocation2 + $0x50] sm:$0xff]
    %v250 = vld [vmem:[#allocation2 + $0x58] sm:$0xff]
    %v251 = vld [vmem:[#allocation2 + $0x60] sm:$0xff]
    %v252 = vld [vmem:[#allocation2 + $0x68] sm:$0xff]
    %v253 = vld [vmem:[#allocation2 + $0x70] sm:$0xff]
    %v254 = vld [vmem:[#allocation2 + $0x78] sm:$0xff]
    %v255 = vld [vmem:[#allocation2 + $0x80] sm:$0xff]
    %v256 = vld [vmem:[#allocation2 + $0x88] sm:$0xff]
    %v257 = vld [vmem:[#allocation2 + $0x90] sm:$0xff]
    %v258 = vld [vmem:[#allocation2 + $0x98] sm:$0xff]
    %v259 = vld [vmem:[#allocation2 + $0xa0] sm:$0xff]
    %v260 = vld [vmem:[#allocation2 + $0xa8] sm:$0xff]
    %v261 = vld [vmem:[#allocation2 + $0xb0] sm:$0xff]
    %v262 = vld [vmem:[#allocation2 + $0xb8] sm:$0xff]
    %v263 = vld [vmem:[#allocation2 + $0xc0] sm:$0xff]
    %v264 = vld [vmem:[#allocation2 + $0xc8] sm:$0xff]
    %v265 = vld [vmem:[#allocation2 + $0xd0] sm:$0xff]
    %v266 = vld [vmem:[#allocation2 + $0xd8] sm:$0xff]
    %v267 = vld [vmem:[#allocation2 + $0xe0] sm:$0xff]
    %v268 = vld [vmem:[#allocation2 + $0xe8] sm:$0xff]
    %v269 = vld [vmem:[#allocation2 + $0xf0] sm:$0xff]
    %v270 = vld [vmem:[#allocation2 + $0xf8] sm:$0xff]
    %v271 = vld [vmem:[#allocation2 + $0x100] sm:$0xff]
    %v272 = vld [vmem:[#allocation2 + $0x108] sm:$0xff]
    %v273 = vld [vmem:[#allocation2 + $0x110] sm:$0xff]
    %v274 = vld [vmem:[#allocation2 + $0x118] sm:$0xff]
    %v275 = vld [vmem:[#allocation2 + $0x120] sm:$0xff]
    %v276 = vld [vmem:[#allocation2 + $0x128] sm:$0xff]
    %v277 = vld [vmem:[#allocation2 + $0x130] sm:$0xff]
    %v278 = vld [vmem:[#allocation2 + $0x138] sm:$0xff]
    %v279 = vld [vmem:[#allocation2 + $0x140] sm:$0xff]
    %v280 = vld [vmem:[#allocation2 + $0x148] sm:$0xff]
    %v281 = vld [vmem:[#allocation2 + $0x150] sm:$0xff]
    %v282 = vld [vmem:[#allocation2 + $0x158] sm:$0xff]
    %v283 = vld [vmem:[#allocation2 + $0x160] sm:$0xff]
    %v284 = vld [vmem:[#allocation2 + $0x168] sm:$0xff]
    %v285 = vld [vmem:[#allocation2 + $0x170] sm:$0xff]
    %v286 = vld [vmem:[#allocation2 + $0x178] sm:$0xff]
    %v287 = vadd.f32 %v217, %v223
    %v288 = vrot.slane %v287, 4
    %v289 = vadd.f32 %v287, %v288
    %v290 = vrot.slane %v289, 2
    %v291 = vadd.f32 %v289, %v290
    %v292 = vrot.slane %v291, 1
    %v293 = vadd.f32 %v291, %v292
    %vm294 = vcmask 523264
    %v295 = vsel %vm294, %v219, 0.0
    %v296 = vsel %vm294, %v225, 0.0
    %v297 = vadd.f32 %v295, %v296
    %v298 = vrot.slane %v297, 4
    %v299 = vadd.f32 %v297, %v298
    %v300 = vrot.slane %v299, 2
    %v301 = vadd.f32 %v299, %v300
    %v302 = vrot.slane %v301, 1
    %v303 = vadd.f32 %v301, %v302
    %v304 = vadd.f32 %v229, %v235
    %v305 = vrot.slane %v304, 4
    %v306 = vadd.f32 %v304, %v305
    %v307 = vrot.slane %v306, 2
    %v308 = vadd.f32 %v306, %v307
    %v309 = vrot.slane %v308, 1
    %v310 = vadd.f32 %v308, %v309
    %v311 = vsel %vm294, %v231, 0.0
    %v312 = vsel %vm294, %v237, 0.0
    %v313 = vadd.f32 %v311, %v312
    %v314 = vrot.slane %v313, 4
    %v315 = vadd.f32 %v313, %v314
    %v316 = vrot.slane %v315, 2
    %v317 = vadd.f32 %v315, %v316
    %v318 = vrot.slane %v317, 1
    %v319 = vadd.f32 %v317, %v318
    %vm324 = vcmask 1041409
    %v325 = vsel %vm324, %v310, %v293
    %v326 = vsel %vm324, %v319, %v303
    %v328 = vsel %vm294, %v326, 0
    %330 = vmatprep.subr.mxu0 %v270
    %331 = vmatpush1.msra.mxu0 %v269
    %332 = vmatprep.subr.mxu0 %v268
    %333 = vmatpush1.msra.mxu0 %v267
    %334 = vmatprep.subr.mxu0 %v266
    %335 = vmatpush1.msra.mxu0 %v265
    %336 = vmatprep.subr.mxu0 %v264
    %337 = vmatpush1.msra.mxu0 %v263
    %338 = vmatprep.subr.mxu0 %v262
    %339 = vmatpush1.msra.mxu0 %v261
    %340 = vmatprep.subr.mxu0 %v260
    %341 = vmatpush1.msra.mxu0 %v259
    %342 = vmatprep.subr.mxu0 %v258
    %343 = vmatpush1.msra.mxu0 %v257
    %344 = vmatprep.subr.mxu0 %v256
    %345 = vmatpush1.msra.mxu0 %v255
    %346 = vmatprep.subr.mxu0 %v254
    %347 = vmatpush1.msra.mxu0 %v253
    %348 = vmatprep.subr.mxu0 %v252
    %349 = vmatpush1.msra.mxu0 %v251
    %350 = vmatprep.subr.mxu0 %v250
    %351 = vmatpush1.msra.mxu0 %v249
    %352 = vmatprep.subr.mxu0 %v248
    %353 = vmatpush1.msra.mxu0 %v247
    %354 = vmatprep.subr.mxu0 %v246
    %355 = vmatpush1.msra.mxu0 %v245
    %356 = vmatprep.subr.mxu0 %v244
    %357 = vmatpush1.msra.mxu0 %v243
    %358 = vmatprep.subr.mxu0 %v242
    %359 = vmatpush1.msra.mxu0 %v241
    %360 = vmatprep.subr.mxu0 %v240
    %361 = vmatpush1.msra.mxu0 %v239
    %362 = vmatprep.subr.mxu0 0.0
    %363 = vmatpush2.msra.mxu0 0.0
    %364 = vmatprep.subr.mxu0 0.0
    %365 = vmatpush2.msra.mxu0 0.0
    %366 = vmatprep.subr.mxu0 0.0
    %367 = vmatpush2.msra.mxu0 0.0
    %368 = vmatprep.subr.mxu0 0.0
    %369 = vmatpush2.msra.mxu0 0.0
    %370 = vmatprep.subr.mxu0 0.0
    %371 = vmatpush2.msra.mxu0 0.0
    %372 = vmatprep.subr.mxu0 0.0
    %373 = vmatpush2.msra.mxu0 0.0
    %374 = vmatprep.subr.mxu0 0.0
    %375 = vmatpush2.msra.mxu0 0.0
    %376 = vmatprep.subr.mxu0 0.0
    %377 = vmatpush2.msra.mxu0 0.0
    %378 = vmatprep.subr.mxu0 %v286
    %379 = vmatpush2.msra.mxu0 %v285
    %380 = vmatprep.subr.mxu0 %v284
    %381 = vmatpush2.msra.mxu0 %v283
    %382 = vmatprep.subr.mxu0 %v282
    %383 = vmatpush2.msra.mxu0 %v281
    %384 = vmatprep.subr.mxu0 %v280
    %385 = vmatpush2.msra.mxu0 %v279
    %386 = vmatprep.subr.mxu0 %v278
    %387 = vmatpush2.msra.mxu0 %v277
    %388 = vmatprep.subr.mxu0 %v276
    %389 = vmatpush2.msra.mxu0 %v275
    %390 = vmatprep.subr.mxu0 %v274
    %391 = vmatpush2.msra.mxu0 %v273
    %392 = vmatprep.subr.mxu0 %v272
    %393 = vmatpush2.msra.mxu0 %v271
    %394 = vmatprep.mubr.f32.mxu0 %v328
    %395 = vmatmul.mubr.f32.gmra.mxu0 %v325
    %v396 = vpop.f32.mrf.mxu0
    %v397 = vadd.f32 0.0, %v396
    %v398 = vpop.f32.mrf.mxu0
    %v399 = vadd.f32 0.0, %v398
    %400 = vdwg.mxu0
    %v403 = vcombine.low %v397, %v399
    %v405 = vunpack.c.l.s4 1966171168
    %v406 = vunpack.c.0.s8 %v405
    %v407 = vlaneseq
    %v408 = vshrl.u32 %v407, 7
    %v409 = vsub.s32 %v406, %v408
    %v410 = vrot.slane %v403, %v409
    %v411 = vcombine.high %v410, %v410
    %v413 = vunpack.c.l.s4 1966171168
    %v414 = vunpack.c.0.s8 %v413
    %v415 = vlaneseq
    %v416 = vshrl.u32 %v415, 7
    %v417 = vsub.s32 %v414, %v416
    %v418 = vrot.slane %v410, %v417
    %v420 = vunpack.c.l.s4 1966171168
    %v421 = vunpack.c.0.s8 %v420
    %v422 = vlaneseq
    %v423 = vshrl.u32 %v422, 7
    %v424 = vsub.s32 %v421, %v423
    %v425 = vrot.slane %v411, %v424
    %v426 = vlaneseq
    %v427 = vshrl.u32 %v426, 7
    %v428 = vsub.s32 0, %v427
    %v429 = vrot.slane %v418, %v428
    %v430 = vlaneseq
    %v431 = vshrl.u32 %v430, 7
    %v432 = vsub.s32 1, %v431
    %v433 = vrot.slane %v418, %v432
    %v434 = vlaneseq
    %v435 = vshrl.u32 %v434, 7
    %v436 = vsub.s32 0, %v435
    %v437 = vrot.slane %v425, %v436
    %v438 = vlaneseq
    %v439 = vshrl.u32 %v438, 7
    %v440 = vsub.s32 1, %v439
    %v441 = vrot.slane %v425, %v440
    %v446 = vsub.f32 %v217, %v429
    %v447 = vsub.f32 %v219, %v433
    %v448 = vsub.f32 %v223, %v429
    %v449 = vsub.f32 %v225, %v433
    %v450 = vsub.f32 %v229, %v437
    %v451 = vsub.f32 %v231, %v441
    %v452 = vsub.f32 %v235, %v437
    %v453 = vsub.f32 %v237, %v441
    %v454 = vmul.f32 %v446, %v446
    %v455 = vmul.f32 %v447, %v447
    %v456 = vmul.f32 %v448, %v448
    %v457 = vmul.f32 %v449, %v449
    %v458 = vmul.f32 %v450, %v450
    %v459 = vmul.f32 %v451, %v451
    %v460 = vmul.f32 %v452, %v452
    %v461 = vmul.f32 %v453, %v453
    %v462 = vadd.f32 %v454, %v456
    %v463 = vrot.slane %v462, 4
    %v464 = vadd.f32 %v462, %v463
    %v465 = vrot.slane %v464, 2
    %v466 = vadd.f32 %v464, %v465
    %v467 = vrot.slane %v466, 1
    %v468 = vadd.f32 %v466, %v467
    %v469 = vsel %vm294, %v455, 0.0
    %v470 = vsel %vm294, %v457, 0.0
    %v471 = vadd.f32 %v469, %v470
    %v472 = vrot.slane %v471, 4
    %v473 = vadd.f32 %v471, %v472
    %v474 = vrot.slane %v473, 2
    %v475 = vadd.f32 %v473, %v474
    %v476 = vrot.slane %v475, 1
    %v477 = vadd.f32 %v475, %v476
    %v478 = vadd.f32 %v458, %v460
    %v479 = vrot.slane %v478, 4
    %v480 = vadd.f32 %v478, %v479
    %v481 = vrot.slane %v480, 2
    %v482 = vadd.f32 %v480, %v481
    %v483 = vrot.slane %v482, 1
    %v484 = vadd.f32 %v482, %v483
    %v485 = vsel %vm294, %v459, 0.0
    %v486 = vsel %vm294, %v461, 0.0
    %v487 = vadd.f32 %v485, %v486
    %v488 = vrot.slane %v487, 4
    %v489 = vadd.f32 %v487, %v488
    %v490 = vrot.slane %v489, 2
    %v491 = vadd.f32 %v489, %v490
    %v492 = vrot.slane %v491, 1
    %v493 = vadd.f32 %v491, %v492
    %v498 = vsel %vm324, %v484, %v468
    %v499 = vsel %vm324, %v493, %v477
    %v501 = vsel %vm294, %v499, 0
    %503 = vmatprep.subr.mxu0 %v270
    %504 = vmatpush1.msra.mxu0 %v269
    %505 = vmatprep.subr.mxu0 %v268
    %506 = vmatpush1.msra.mxu0 %v267
    %507 = vmatprep.subr.mxu0 %v266
    %508 = vmatpush1.msra.mxu0 %v265
    %509 = vmatprep.subr.mxu0 %v264
    %510 = vmatpush1.msra.mxu0 %v263
    %511 = vmatprep.subr.mxu0 %v262
    %512 = vmatpush1.msra.mxu0 %v261
    %513 = vmatprep.subr.mxu0 %v260
    %514 = vmatpush1.msra.mxu0 %v259
    %515 = vmatprep.subr.mxu0 %v258
    %516 = vmatpush1.msra.mxu0 %v257
    %517 = vmatprep.subr.mxu0 %v256
    %518 = vmatpush1.msra.mxu0 %v255
    %519 = vmatprep.subr.mxu0 %v254
    %520 = vmatpush1.msra.mxu0 %v253
    %521 = vmatprep.subr.mxu0 %v252
    %522 = vmatpush1.msra.mxu0 %v251
    %523 = vmatprep.subr.mxu0 %v250
    %524 = vmatpush1.msra.mxu0 %v249
    %525 = vmatprep.subr.mxu0 %v248
    %526 = vmatpush1.msra.mxu0 %v247
    %527 = vmatprep.subr.mxu0 %v246
    %528 = vmatpush1.msra.mxu0 %v245
    %529 = vmatprep.subr.mxu0 %v244
    %530 = vmatpush1.msra.mxu0 %v243
    %531 = vmatprep.subr.mxu0 %v242
    %532 = vmatpush1.msra.mxu0 %v241
    %533 = vmatprep.subr.mxu0 %v240
    %534 = vmatpush1.msra.mxu0 %v239
    %535 = vmatprep.subr.mxu0 0.0
    %536 = vmatpush2.msra.mxu0 0.0
    %537 = vmatprep.subr.mxu0 0.0
    %538 = vmatpush2.msra.mxu0 0.0
    %539 = vmatprep.subr.mxu0 0.0
    %540 = vmatpush2.msra.mxu0 0.0
    %541 = vmatprep.subr.mxu0 0.0
    %542 = vmatpush2.msra.mxu0 0.0
    %543 = vmatprep.subr.mxu0 0.0
    %544 = vmatpush2.msra.mxu0 0.0
    %545 = vmatprep.subr.mxu0 0.0
    %546 = vmatpush2.msra.mxu0 0.0
    %547 = vmatprep.subr.mxu0 0.0
    %548 = vmatpush2.msra.mxu0 0.0
    %549 = vmatprep.subr.mxu0 0.0
    %550 = vmatpush2.msra.mxu0 0.0
    %551 = vmatprep.subr.mxu0 %v286
    %552 = vmatpush2.msra.mxu0 %v285
    %553 = vmatprep.subr.mxu0 %v284
    %554 = vmatpush2.msra.mxu0 %v283
    %555 = vmatprep.subr.mxu0 %v282
    %556 = vmatpush2.msra.mxu0 %v281
    %557 = vmatprep.subr.mxu0 %v280
    %558 = vmatpush2.msra.mxu0 %v279
    %559 = vmatprep.subr.mxu0 %v278
    %560 = vmatpush2.msra.mxu0 %v277
    %561 = vmatprep.subr.mxu0 %v276
    %562 = vmatpush2.msra.mxu0 %v275
    %563 = vmatprep.subr.mxu0 %v274
    %564 = vmatpush2.msra.mxu0 %v273
    %565 = vmatprep.subr.mxu0 %v272
    %566 = vmatpush2.msra.mxu0 %v271
    %567 = vmatprep.mubr.f32.mxu0 %v501
    %568 = vmatmul.mubr.f32.gmra.mxu0 %v498
    %v569 = vpop.f32.mrf.mxu0
    %v570 = vadd.f32 1e-05, %v569
    %v571 = vpop.f32.mrf.mxu0
    %v572 = vadd.f32 1e-05, %v571
    %573 = vdwg.mxu0
    %v574 = vrsqrt.pop %v570
    %v575 = vrsqrt.pop %v572
    %v578 = vcombine.low %v574, %v575
    %v580 = vunpack.c.l.s4 1966171168
    %v581 = vunpack.c.0.s8 %v580
    %v582 = vlaneseq
    %v583 = vshrl.u32 %v582, 7
    %v584 = vsub.s32 %v581, %v583
    %v585 = vrot.slane %v578, %v584
    %v586 = vcombine.high %v585, %v585
    %v588 = vunpack.c.l.s4 1966171168
    %v589 = vunpack.c.0.s8 %v588
    %v590 = vlaneseq
    %v591 = vshrl.u32 %v590, 7
    %v592 = vsub.s32 %v589, %v591
    %v593 = vrot.slane %v585, %v592
    %v595 = vunpack.c.l.s4 1966171168
    %v596 = vunpack.c.0.s8 %v595
    %v597 = vlaneseq
    %v598 = vshrl.u32 %v597, 7
    %v599 = vsub.s32 %v596, %v598
    %v600 = vrot.slane %v586, %v599
    %v601 = vlaneseq
    %v602 = vshrl.u32 %v601, 7
    %v603 = vsub.s32 0, %v602
    %v604 = vrot.slane %v593, %v603
    %v605 = vlaneseq
    %v606 = vshrl.u32 %v605, 7
    %v607 = vsub.s32 1, %v606
    %v608 = vrot.slane %v593, %v607
    %v609 = vlaneseq
    %v610 = vshrl.u32 %v609, 7
    %v611 = vsub.s32 0, %v610
    %v612 = vrot.slane %v600, %v611
    %v613 = vlaneseq
    %v614 = vshrl.u32 %v613, 7
    %v615 = vsub.s32 1, %v614
    %v616 = vrot.slane %v600, %v615
    %v621 = vmul.f32 %v446, %v604
    %v622 = vmul.f32 %v447, %v608
    %v623 = vmul.f32 %v448, %v604
    %v624 = vmul.f32 %v449, %v608
    %v625 = vmul.f32 %v450, %v612
    %v626 = vmul.f32 %v451, %v616
    %v627 = vmul.f32 %v452, %v612
    %v628 = vmul.f32 %v453, %v616
    %v629 = vlaneseq
    %v630 = vshrl.u32 %v629, 7
    %v631 = vsub.s32 1, %v630
    %v632 = vrot.slane %v37, %v631
    %v633 = vlaneseq
    %v634 = vshrl.u32 %v633, 7
    %v635 = vsub.s32 5, %v634
    %v636 = vrot.slane %v37, %v635
    %v639 = vlaneseq
    %v640 = vshrl.u32 %v639, 7
    %v641 = vsub.s32 1, %v640
    %v642 = vrot.slane %v632, %v641
    %v643 = vlaneseq
    %v644 = vshrl.u32 %v643, 7
    %v645 = vsub.s32 1, %v644
    %v646 = vrot.slane %v636, %v645
    %v647 = vmul.f32 %v621, %v642
    %v648 = vmul.f32 %v622, %v646
    %v649 = vmul.f32 %v623, %v642
    %v650 = vmul.f32 %v624, %v646
    %v651 = vmul.f32 %v625, %v642
    %v652 = vmul.f32 %v626, %v646
    %v653 = vmul.f32 %v627, %v642
    %v654 = vmul.f32 %v628, %v646
    %v655 = vlaneseq
    %v656 = vshrl.u32 %v655, 7
    %v657 = vsub.s32 2, %v656
    %v658 = vrot.slane %v37, %v657
    %v659 = vlaneseq
    %v660 = vshrl.u32 %v659, 7
    %v661 = vsub.s32 6, %v660
    %v662 = vrot.slane %v37, %v661
    %v665 = vlaneseq
    %v666 = vshrl.u32 %v665, 7
    %v667 = vsub.s32 2, %v666
    %v668 = vrot.slane %v658, %v667
    %v669 = vlaneseq
    %v670 = vshrl.u32 %v669, 7
    %v671 = vsub.s32 2, %v670
    %v672 = vrot.slane %v662, %v671
    %v673 = vadd.f32 %v647, %v668
    %v674 = vadd.f32 %v648, %v672
    %v675 = vadd.f32 %v649, %v668
    %v676 = vadd.f32 %v650, %v672
    %v677 = vadd.f32 %v651, %v668
    %v678 = vadd.f32 %v652, %v672
    %v679 = vadd.f32 %v653, %v668
    %v680 = vadd.f32 %v654, %v672
    %vm681 = vcmp.ge.f32.partialorder %v673, 0.0
    %vm682 = vcmp.ge.f32.partialorder %v674, 0.0
    %vm683 = vcmp.ge.f32.partialorder %v675, 0.0
    %vm684 = vcmp.ge.f32.partialorder %v676, 0.0
    %vm685 = vcmp.ge.f32.partialorder %v677, 0.0
    %vm686 = vcmp.ge.f32.partialorder %v678, 0.0
    %vm687 = vcmp.ge.f32.partialorder %v679, 0.0
    %vm688 = vcmp.ge.f32.partialorder %v680, 0.0
    %v689 = vmul.f32 %v673, 0.1
    %v690 = vmul.f32 %v674, 0.1
    %v691 = vmul.f32 %v675, 0.1
    %v692 = vmul.f32 %v676, 0.1
    %v693 = vmul.f32 %v677, 0.1
    %v694 = vmul.f32 %v678, 0.1
    %v695 = vmul.f32 %v679, 0.1
    %v696 = vmul.f32 %v680, 0.1
    %v697 = vsel %vm681, %v673, %v689
    %v698 = vsel %vm682, %v674, %v690
    %v699 = vsel %vm683, %v675, %v691
    %v700 = vsel %vm684, %v676, %v692
    %v701 = vsel %vm685, %v677, %v693
    %v702 = vsel %vm686, %v678, %v694
    %v703 = vsel %vm687, %v679, %v695
    %v704 = vsel %vm688, %v680, %v696
    %v705 = vld [vmem:[%s5] sm:$0xff]
    %v706 = vld [vmem:[%s5 + $0x8] sm:$0xff]
    %v707 = vld [vmem:[%s5 + $0x10] sm:$0xff]
    %v708 = vld [vmem:[%s5 + $0x18] sm:$0xff]
    %v709 = vld [vmem:[%s5 + $0x20] sm:$0xff]
    %v710 = vld [vmem:[%s5 + $0x28] sm:$0xff]
    %v711 = vld [vmem:[%s5 + $0x30] sm:$0xff]
    %v712 = vld [vmem:[%s5 + $0x38] sm:$0xff]
    %v713 = vld [vmem:[%s5 + $0x40] sm:$0xff]
    %v714 = vld [vmem:[%s5 + $0x48] sm:$0xff]
    %v715 = vld [vmem:[%s5 + $0x50] sm:$0xff]
    %v716 = vld [vmem:[%s5 + $0x58] sm:$0xff]
    %v717 = vld [vmem:[%s5 + $0x60] sm:$0xff]
    %v718 = vld [vmem:[%s5 + $0x68] sm:$0xff]
    %v719 = vld [vmem:[%s5 + $0x70] sm:$0xff]
    %v720 = vld [vmem:[%s5 + $0x78] sm:$0xff]
    %v721 = vmul.f32 %v698, %v705
    %v722 = vmul.f32 %v700, %v706
    %v723 = vmul.f32 %v698, %v707
    %v724 = vmul.f32 %v700, %v708
    %v725 = vmul.f32 %v698, %v709
    %v726 = vmul.f32 %v700, %v710
    %v727 = vmul.f32 %v698, %v711
    %v728 = vmul.f32 %v700, %v712
    %v729 = vmul.f32 %v698, %v713
    %v730 = vmul.f32 %v700, %v714
    %v731 = vmul.f32 %v698, %v715
    %v732 = vmul.f32 %v700, %v716
    %v733 = vmul.f32 %v698, %v717
    %v734 = vmul.f32 %v700, %v718
    %v735 = vmul.f32 %v698, %v719
    %v736 = vmul.f32 %v700, %v720
    %v737 = vmul.f32 %v702, %v705
    %v738 = vmul.f32 %v704, %v706
    %v739 = vmul.f32 %v702, %v707
    %v740 = vmul.f32 %v704, %v708
    %v741 = vmul.f32 %v702, %v709
    %v742 = vmul.f32 %v704, %v710
    %v743 = vmul.f32 %v702, %v711
    %v744 = vmul.f32 %v704, %v712
    %v745 = vmul.f32 %v702, %v713
    %v746 = vmul.f32 %v704, %v714
    %v747 = vmul.f32 %v702, %v715
    %v748 = vmul.f32 %v704, %v716
    %v749 = vmul.f32 %v702, %v717
    %v750 = vmul.f32 %v704, %v718
    %v751 = vmul.f32 %v702, %v719
    %v752 = vmul.f32 %v704, %v720
    %v753 = vmul.f32 %v697, %v705
    %v754 = vmul.f32 %v699, %v706
    %v755 = vmul.f32 %v697, %v707
    %v756 = vmul.f32 %v699, %v708
    %v757 = vmul.f32 %v697, %v709
    %v758 = vmul.f32 %v699, %v710
    %v759 = vmul.f32 %v697, %v711
    %v760 = vmul.f32 %v699, %v712
    %v761 = vmul.f32 %v697, %v713
    %v762 = vmul.f32 %v699, %v714
    %v763 = vmul.f32 %v697, %v715
    %v764 = vmul.f32 %v699, %v716
    %v765 = vmul.f32 %v697, %v717
    %v766 = vmul.f32 %v699, %v718
    %v767 = vmul.f32 %v697, %v719
    %v768 = vmul.f32 %v699, %v720
    %v769 = vmul.f32 %v701, %v705
    %v770 = vmul.f32 %v703, %v706
    %v771 = vmul.f32 %v701, %v707
    %v772 = vmul.f32 %v703, %v708
    %v773 = vmul.f32 %v701, %v709
    %v774 = vmul.f32 %v703, %v710
    %v775 = vmul.f32 %v701, %v711
    %v776 = vmul.f32 %v703, %v712
    %v777 = vmul.f32 %v701, %v713
    %v778 = vmul.f32 %v703, %v714
    %v779 = vmul.f32 %v701, %v715
    %v780 = vmul.f32 %v703, %v716
    %v781 = vmul.f32 %v701, %v717
    %v782 = vmul.f32 %v703, %v718
    %v783 = vmul.f32 %v701, %v719
    %v784 = vmul.f32 %v703, %v720
    %787 = vrot.lane.b32.xlu0 %v697, 64
    %v788 = vpop.permute.xlu0 %787
    %789 = vrot.lane.b32.xlu0 %v699, 64
    %v790 = vpop.permute.xlu0 %789
    %v791 = vsel %vm294, %v788, 0
    %v793 = vsel %vm294, %v790, 0
    %v796 = vsel %vm294, %v721, 0
    %v799 = vsel %vm294, %v722, 0
    %v802 = vsel %vm294, %v723, 0
    %v805 = vsel %vm294, %v724, 0
    %v808 = vsel %vm294, %v725, 0
    %v811 = vsel %vm294, %v726, 0
    %v814 = vsel %vm294, %v727, 0
    %v817 = vsel %vm294, %v728, 0
    %v820 = vsel %vm294, %v729, 0
    %v823 = vsel %vm294, %v730, 0
    %v826 = vsel %vm294, %v731, 0
    %v829 = vsel %vm294, %v732, 0
    %v832 = vsel %vm294, %v733, 0
    %v835 = vsel %vm294, %v734, 0
    %v838 = vsel %vm294, %v735, 0
    %v841 = vsel %vm294, %v736, 0
    %843 = vmatprep.subr.mxu0 0.0
    %844 = vmatpush1.xpose.msra.mxu0 %v841
    %845 = vmatprep.subr.mxu0 0.0
    %846 = vmatpush1.xpose.msra.mxu0 %v838
    %847 = vmatprep.subr.mxu0 0.0
    %848 = vmatpush1.xpose.msra.mxu0 %v835
    %849 = vmatprep.subr.mxu0 0.0
    %850 = vmatpush1.xpose.msra.mxu0 %v832
    %851 = vmatprep.subr.mxu0 0.0
    %852 = vmatpush1.xpose.msra.mxu0 %v829
    %853 = vmatprep.subr.mxu0 0.0
    %854 = vmatpush1.xpose.msra.mxu0 %v826
    %855 = vmatprep.subr.mxu0 0.0
    %856 = vmatpush1.xpose.msra.mxu0 %v823
    %857 = vmatprep.subr.mxu0 0.0
    %858 = vmatpush1.xpose.msra.mxu0 %v820
    %859 = vmatprep.subr.mxu0 0.0
    %860 = vmatpush1.xpose.msra.mxu0 %v817
    %861 = vmatprep.subr.mxu0 0.0
    %862 = vmatpush1.xpose.msra.mxu0 %v814
    %863 = vmatprep.subr.mxu0 0.0
    %864 = vmatpush1.xpose.msra.mxu0 %v811
    %865 = vmatprep.subr.mxu0 0.0
    %866 = vmatpush1.xpose.msra.mxu0 %v808
    %867 = vmatprep.subr.mxu0 0.0
    %868 = vmatpush1.xpose.msra.mxu0 %v805
    %869 = vmatprep.subr.mxu0 0.0
    %870 = vmatpush1.xpose.msra.mxu0 %v802
    %871 = vmatprep.subr.mxu0 0.0
    %872 = vmatpush1.xpose.msra.mxu0 %v799
    %873 = vmatprep.subr.mxu0 0.0
    %874 = vmatpush1.xpose.msra.mxu0 %v796
    %875 = vmatprep.subr.mxu0 0.0
    %876 = vmatpush2.xpose.msra.mxu0 0.0
    %877 = vmatprep.subr.mxu0 0.0
    %878 = vmatpush2.xpose.msra.mxu0 0.0
    %879 = vmatprep.subr.mxu0 0.0
    %880 = vmatpush2.xpose.msra.mxu0 0.0
    %881 = vmatprep.subr.mxu0 0.0
    %882 = vmatpush2.xpose.msra.mxu0 0.0
    %883 = vmatprep.subr.mxu0 0.0
    %884 = vmatpush2.xpose.msra.mxu0 0.0
    %885 = vmatprep.subr.mxu0 0.0
    %886 = vmatpush2.xpose.msra.mxu0 0.0
    %887 = vmatprep.subr.mxu0 0.0
    %888 = vmatpush2.xpose.msra.mxu0 0.0
    %889 = vmatprep.subr.mxu0 0.0
    %890 = vmatpush2.xpose.msra.mxu0 0.0
    %891 = vmatprep.subr.mxu0 0.0
    %892 = vmatpush2.xpose.msra.mxu0 0.0
    %893 = vmatprep.subr.mxu0 0.0
    %894 = vmatpush2.xpose.msra.mxu0 0.0
    %895 = vmatprep.subr.mxu0 0.0
    %896 = vmatpush2.xpose.msra.mxu0 0.0
    %897 = vmatprep.subr.mxu0 0.0
    %898 = vmatpush2.xpose.msra.mxu0 0.0
    %899 = vmatprep.subr.mxu0 0.0
    %900 = vmatpush2.xpose.msra.mxu0 0.0
    %901 = vmatprep.subr.mxu0 0.0
    %902 = vmatpush2.xpose.msra.mxu0 0.0
    %903 = vmatprep.subr.mxu0 0.0
    %904 = vmatpush2.xpose.msra.mxu0 0.0
    %905 = vmatprep.subr.mxu0 0.0
    %906 = vmatpush2.xpose.msra.mxu0 0.0
    %907 = vmatprep.mubr.f32.mxu0 0.0
    %908 = vmatmul.mubr.f32.gmra.mxu0 %v791
    %v909 = vpop.f32.mrf.mxu0
    %v910 = vadd.f32 0.0, %v909
    %v911 = vpop.f32.mrf.mxu0
    %912 = vmatprep.mubr.f32.mxu0 0.0
    %913 = vmatmul.mubr.f32.gmra.mxu0 %v793
    %v914 = vpop.f32.mrf.mxu0
    %v915 = vadd.f32 0.0, %v914
    %v916 = vpop.f32.mrf.mxu0
    %917 = vdwg.mxu0
    %920 = vrot.lane.b32.xlu0 %v701, 64
    %v921 = vpop.permute.xlu0 %920
    %922 = vrot.lane.b32.xlu0 %v703, 64
    %v923 = vpop.permute.xlu0 %922
    %v924 = vsel %vm294, %v921, 0
    %v926 = vsel %vm294, %v923, 0
    %v929 = vsel %vm294, %v737, 0
    %v932 = vsel %vm294, %v738, 0
    %v935 = vsel %vm294, %v739, 0
    %v938 = vsel %vm294, %v740, 0
    %v941 = vsel %vm294, %v741, 0
    %v944 = vsel %vm294, %v742, 0
    %v947 = vsel %vm294, %v743, 0
    %v950 = vsel %vm294, %v744, 0
    %v953 = vsel %vm294, %v745, 0
    %v956 = vsel %vm294, %v746, 0
    %v959 = vsel %vm294, %v747, 0
    %v962 = vsel %vm294, %v748, 0
    %v965 = vsel %vm294, %v749, 0
    %v968 = vsel %vm294, %v750, 0
    %v971 = vsel %vm294, %v751, 0
    %v974 = vsel %vm294, %v752, 0
    %976 = vmatprep.subr.mxu0 0.0
    %977 = vmatpush1.xpose.msra.mxu0 %v974
    %978 = vmatprep.subr.mxu0 0.0
    %979 = vmatpush1.xpose.msra.mxu0 %v971
    %980 = vmatprep.subr.mxu0 0.0
    %981 = vmatpush1.xpose.msra.mxu0 %v968
    %982 = vmatprep.subr.mxu0 0.0
    %983 = vmatpush1.xpose.msra.mxu0 %v965
    %984 = vmatprep.subr.mxu0 0.0
    %985 = vmatpush1.xpose.msra.mxu0 %v962
    %986 = vmatprep.subr.mxu0 0.0
    %987 = vmatpush1.xpose.msra.mxu0 %v959
    %988 = vmatprep.subr.mxu0 0.0
    %989 = vmatpush1.xpose.msra.mxu0 %v956
    %990 = vmatprep.subr.mxu0 0.0
    %991 = vmatpush1.xpose.msra.mxu0 %v953
    %992 = vmatprep.subr.mxu0 0.0
    %993 = vmatpush1.xpose.msra.mxu0 %v950
    %994 = vmatprep.subr.mxu0 0.0
    %995 = vmatpush1.xpose.msra.mxu0 %v947
    %996 = vmatprep.subr.mxu0 0.0
    %997 = vmatpush1.xpose.msra.mxu0 %v944
    %998 = vmatprep.subr.mxu0 0.0
    %999 = vmatpush1.xpose.msra.mxu0 %v941
    %1000 = vmatprep.subr.mxu0 0.0
    %1001 = vmatpush1.xpose.msra.mxu0 %v938
    %1002 = vmatprep.subr.mxu0 0.0
    %1003 = vmatpush1.xpose.msra.mxu0 %v935
    %1004 = vmatprep.subr.mxu0 0.0
    %1005 = vmatpush1.xpose.msra.mxu0 %v932
    %1006 = vmatprep.subr.mxu0 0.0
    %1007 = vmatpush1.xpose.msra.mxu0 %v929
    %1008 = vmatprep.subr.mxu0 0.0
    %1009 = vmatpush2.xpose.msra.mxu0 0.0
    %1010 = vmatprep.subr.mxu0 0.0
    %1011 = vmatpush2.xpose.msra.mxu0 0.0
    %1012 = vmatprep.subr.mxu0 0.0
    %1013 = vmatpush2.xpose.msra.mxu0 0.0
    %1014 = vmatprep.subr.mxu0 0.0
    %1015 = vmatpush2.xpose.msra.mxu0 0.0
    %1016 = vmatprep.subr.mxu0 0.0
    %1017 = vmatpush2.xpose.msra.mxu0 0.0
    %1018 = vmatprep.subr.mxu0 0.0
    %1019 = vmatpush2.xpose.msra.mxu0 0.0
    %1020 = vmatprep.subr.mxu0 0.0
    %1021 = vmatpush2.xpose.msra.mxu0 0.0
    %1022 = vmatprep.subr.mxu0 0.0
    %1023 = vmatpush2.xpose.msra.mxu0 0.0
    %1024 = vmatprep.subr.mxu0 0.0
    %1025 = vmatpush2.xpose.msra.mxu0 0.0
    %1026 = vmatprep.subr.mxu0 0.0
    %1027 = vmatpush2.xpose.msra.mxu0 0.0
    %1028 = vmatprep.subr.mxu0 0.0
    %1029 = vmatpush2.xpose.msra.mxu0 0.0
    %1030 = vmatprep.subr.mxu0 0.0
    %1031 = vmatpush2.xpose.msra.mxu0 0.0
    %1032 = vmatprep.subr.mxu0 0.0
    %1033 = vmatpush2.xpose.msra.mxu0 0.0
    %1034 = vmatprep.subr.mxu0 0.0
    %1035 = vmatpush2.xpose.msra.mxu0 0.0
    %1036 = vmatprep.subr.mxu0 0.0
    %1037 = vmatpush2.xpose.msra.mxu0 0.0
    %1038 = vmatprep.subr.mxu0 0.0
    %1039 = vmatpush2.xpose.msra.mxu0 0.0
    %1040 = vmatprep.mubr.f32.mxu0 0.0
    %1041 = vmatmul.mubr.f32.gmra.mxu0 %v924
    %v1042 = vpop.f32.mrf.mxu0
    %v1043 = vadd.f32 0.0, %v1042
    %v1044 = vpop.f32.mrf.mxu0
    %1045 = vmatprep.mubr.f32.mxu0 0.0
    %1046 = vmatmul.mubr.f32.gmra.mxu0 %v926
    %v1047 = vpop.f32.mrf.mxu0
    %v1048 = vadd.f32 0.0, %v1047
    %v1049 = vpop.f32.mrf.mxu0
    %1050 = vdwg.mxu0
    %1051 = vmax.xlane.f32.xlu0 %v910
    %v1052 = vpop.xlane.xlu0 %1051
    %1053 = vmax.xlane.f32.xlu0 %v915
    %v1054 = vpop.xlane.xlu0 %1053
    %1055 = vmax.xlane.f32.xlu0 %v1043
    %v1056 = vpop.xlane.xlu0 %1055
    %1057 = vmax.xlane.f32.xlu0 %v1048
    %v1058 = vpop.xlane.xlu0 %1057
    %v1059 = vsub.f32 %v910, %v1052
    %v1060 = vsub.f32 %v915, %v1054
    %v1061 = vsub.f32 %v1043, %v1056
    %v1062 = vsub.f32 %v1048, %v1058
    %v1063 = vmul.f32 %v1059, 1.442695
    %v1064 = vpow.pop %v1063
    %v1065 = vmul.f32 %v1060, 1.442695
    %v1066 = vpow.pop %v1065
    %v1067 = vmul.f32 %v1061, 1.442695
    %v1068 = vpow.pop %v1067
    %v1069 = vmul.f32 %v1062, 1.442695
    %v1070 = vpow.pop %v1069
    %v1071 = vld [vmem:[%s4] sm:$0xff]
    %v1072 = vld [vmem:[%s4 + $0x8] sm:$0xff]
    %v1073 = vld [vmem:[%s4 + $0x10] sm:$0xff]
    %v1074 = vld [vmem:[%s4 + $0x18] sm:$0xff]
    %v1075 = vld [vmem:[%s4 + $0x20] sm:$0xff]
    %v1076 = vld [vmem:[%s4 + $0x28] sm:$0xff]
    %v1077 = vld [vmem:[%s4 + $0x30] sm:$0xff]
    %v1078 = vld [vmem:[%s4 + $0x38] sm:$0xff]
    %v1079 = vld [vmem:[%s4 + $0x40] sm:$0xff]
    %v1080 = vld [vmem:[%s4 + $0x48] sm:$0xff]
    %v1081 = vld [vmem:[%s4 + $0x50] sm:$0xff]
    %v1082 = vld [vmem:[%s4 + $0x58] sm:$0xff]
    %v1083 = vld [vmem:[%s4 + $0x60] sm:$0xff]
    %v1084 = vld [vmem:[%s4 + $0x68] sm:$0xff]
    %v1085 = vld [vmem:[%s4 + $0x70] sm:$0xff]
    %v1086 = vld [vmem:[%s4 + $0x78] sm:$0xff]
    %1087 = vmatprep.subr.mxu0 0.0
    %1088 = vmatpush1.msra.mxu0 %v1086
    %1089 = vmatprep.subr.mxu0 0.0
    %1090 = vmatpush1.msra.mxu0 %v1085
    %1091 = vmatprep.subr.mxu0 0.0
    %1092 = vmatpush1.msra.mxu0 %v1084
    %1093 = vmatprep.subr.mxu0 0.0
    %1094 = vmatpush1.msra.mxu0 %v1083
    %1095 = vmatprep.subr.mxu0 0.0
    %1096 = vmatpush1.msra.mxu0 %v1082
    %1097 = vmatprep.subr.mxu0 0.0
    %1098 = vmatpush1.msra.mxu0 %v1081
    %1099 = vmatprep.subr.mxu0 0.0
    %1100 = vmatpush1.msra.mxu0 %v1080
    %1101 = vmatprep.subr.mxu0 0.0
    %1102 = vmatpush1.msra.mxu0 %v1079
    %1103 = vmatprep.subr.mxu0 0.0
    %1104 = vmatpush1.msra.mxu0 %v1078
    %1105 = vmatprep.subr.mxu0 0.0
    %1106 = vmatpush1.msra.mxu0 %v1077
    %1107 = vmatprep.subr.mxu0 0.0
    %1108 = vmatpush1.msra.mxu0 %v1076
    %1109 = vmatprep.subr.mxu0 0.0
    %1110 = vmatpush1.msra.mxu0 %v1075
    %1111 = vmatprep.subr.mxu0 0.0
    %1112 = vmatpush1.msra.mxu0 %v1074
    %1113 = vmatprep.subr.mxu0 0.0
    %1114 = vmatpush1.msra.mxu0 %v1073
    %1115 = vmatprep.subr.mxu0 0.0
    %1116 = vmatpush1.msra.mxu0 %v1072
    %1117 = vmatprep.subr.mxu0 0.0
    %1118 = vmatpush1.msra.mxu0 %v1071
    %1119 = vmatprep.subr.mxu0 0.0
    %1120 = vmatpush2.msra.mxu0 0.0
    %1121 = vmatprep.subr.mxu0 0.0
    %1122 = vmatpush2.msra.mxu0 0.0
    %1123 = vmatprep.subr.mxu0 0.0
    %1124 = vmatpush2.msra.mxu0 0.0
    %1125 = vmatprep.subr.mxu0 0.0
    %1126 = vmatpush2.msra.mxu0 0.0
    %1127 = vmatprep.subr.mxu0 0.0
    %1128 = vmatpush2.msra.mxu0 0.0
    %1129 = vmatprep.subr.mxu0 0.0
    %1130 = vmatpush2.msra.mxu0 0.0
    %1131 = vmatprep.subr.mxu0 0.0
    %1132 = vmatpush2.msra.mxu0 0.0
    %1133 = vmatprep.subr.mxu0 0.0
    %1134 = vmatpush2.msra.mxu0 0.0
    %1135 = vmatprep.subr.mxu0 0.0
    %1136 = vmatpush2.msra.mxu0 0.0
    %1137 = vmatprep.subr.mxu0 0.0
    %1138 = vmatpush2.msra.mxu0 0.0
    %1139 = vmatprep.subr.mxu0 0.0
    %1140 = vmatpush2.msra.mxu0 0.0
    %1141 = vmatprep.subr.mxu0 0.0
    %1142 = vmatpush2.msra.mxu0 0.0
    %1143 = vmatprep.subr.mxu0 0.0
    %1144 = vmatpush2.msra.mxu0 0.0
    %1145 = vmatprep.subr.mxu0 0.0
    %1146 = vmatpush2.msra.mxu0 0.0
    %1147 = vmatprep.subr.mxu0 0.0
    %1148 = vmatpush2.msra.mxu0 0.0
    %1149 = vmatprep.subr.mxu0 0.0
    %1150 = vmatpush2.msra.mxu0 0.0
    %1151 = vmatprep.mubr.f32.mxu0 0.0
    %1152 = vmatmul.mubr.f32.gmra.mxu0 %v1064
    %v1153 = vpop.f32.mrf.mxu0
    %v1154 = vadd.f32 0.0, %v1153
    %v1155 = vpop.f32.mrf.mxu0
    %1156 = vmatprep.mubr.f32.mxu0 0.0
    %1157 = vmatmul.mubr.f32.gmra.mxu0 %v1066
    %v1158 = vpop.f32.mrf.mxu0
    %v1159 = vadd.f32 0.0, %v1158
    %v1160 = vpop.f32.mrf.mxu0
    %1161 = vmatprep.mubr.f32.mxu0 0.0
    %1162 = vmatmul.mubr.f32.gmra.mxu0 %v1068
    %v1163 = vpop.f32.mrf.mxu0
    %v1164 = vadd.f32 0.0, %v1163
    %v1165 = vpop.f32.mrf.mxu0
    %1166 = vmatprep.mubr.f32.mxu0 0.0
    %1167 = vmatmul.mubr.f32.gmra.mxu0 %v1070
    %v1168 = vpop.f32.mrf.mxu0
    %v1169 = vadd.f32 0.0, %v1168
    %v1170 = vpop.f32.mrf.mxu0
    %1171 = vdwg.mxu0
    %v1172 = vrcp.pop %v1154
    %v1173 = vrcp.pop %v1159
    %v1174 = vrcp.pop %v1164
    %v1175 = vrcp.pop %v1169
    %v1176 = vmul.f32 %v1154, %v1172
    %v1177 = vmul.f32 %v1159, %v1173
    %v1178 = vmul.f32 %v1164, %v1174
    %v1179 = vmul.f32 %v1169, %v1175
    %v1180 = vsub.f32 2.0, %v1176
    %v1181 = vsub.f32 2.0, %v1177
    %v1182 = vsub.f32 2.0, %v1178
    %v1183 = vsub.f32 2.0, %v1179
    %v1184 = vmul.f32 %v1172, %v1180
    %v1185 = vmul.f32 %v1173, %v1181
    %v1186 = vmul.f32 %v1174, %v1182
    %v1187 = vmul.f32 %v1175, %v1183
    %v1188 = vmul.f32 %v1064, %v1184
    %v1189 = vmul.f32 %v1066, %v1185
    %v1190 = vmul.f32 %v1068, %v1186
    %v1191 = vmul.f32 %v1070, %v1187
    %1192 = vmatprep.subr.mxu0 0.0
    %1193 = vmatpush1.msra.mxu0 %v768
    %1194 = vmatprep.subr.mxu0 0.0
    %1195 = vmatpush1.msra.mxu0 %v767
    %1196 = vmatprep.subr.mxu0 0.0
    %1197 = vmatpush1.msra.mxu0 %v766
    %1198 = vmatprep.subr.mxu0 0.0
    %1199 = vmatpush1.msra.mxu0 %v765
    %1200 = vmatprep.subr.mxu0 0.0
    %1201 = vmatpush1.msra.mxu0 %v764
    %1202 = vmatprep.subr.mxu0 0.0
    %1203 = vmatpush1.msra.mxu0 %v763
    %1204 = vmatprep.subr.mxu0 0.0
    %1205 = vmatpush1.msra.mxu0 %v762
    %1206 = vmatprep.subr.mxu0 0.0
    %1207 = vmatpush1.msra.mxu0 %v761
    %1208 = vmatprep.subr.mxu0 0.0
    %1209 = vmatpush1.msra.mxu0 %v760
    %1210 = vmatprep.subr.mxu0 0.0
    %1211 = vmatpush1.msra.mxu0 %v759
    %1212 = vmatprep.subr.mxu0 0.0
    %1213 = vmatpush1.msra.mxu0 %v758
    %1214 = vmatprep.subr.mxu0 0.0
    %1215 = vmatpush1.msra.mxu0 %v757
    %1216 = vmatprep.subr.mxu0 0.0
    %1217 = vmatpush1.msra.mxu0 %v756
    %1218 = vmatprep.subr.mxu0 0.0
    %1219 = vmatpush1.msra.mxu0 %v755
    %1220 = vmatprep.subr.mxu0 0.0
    %1221 = vmatpush1.msra.mxu0 %v754
    %1222 = vmatprep.subr.mxu0 0.0
    %1223 = vmatpush1.msra.mxu0 %v753
    %1224 = vmatprep.subr.mxu0 0.0
    %1225 = vmatpush2.msra.mxu0 0.0
    %1226 = vmatprep.subr.mxu0 0.0
    %1227 = vmatpush2.msra.mxu0 0.0
    %1228 = vmatprep.subr.mxu0 0.0
    %1229 = vmatpush2.msra.mxu0 0.0
    %1230 = vmatprep.subr.mxu0 0.0
    %1231 = vmatpush2.msra.mxu0 0.0
    %1232 = vmatprep.subr.mxu0 0.0
    %1233 = vmatpush2.msra.mxu0 0.0
    %1234 = vmatprep.subr.mxu0 0.0
    %1235 = vmatpush2.msra.mxu0 0.0
    %1236 = vmatprep.subr.mxu0 0.0
    %1237 = vmatpush2.msra.mxu0 0.0
    %1238 = vmatprep.subr.mxu0 0.0
    %1239 = vmatpush2.msra.mxu0 0.0
    %1240 = vmatprep.subr.mxu0 0.0
    %1241 = vmatpush2.msra.mxu0 0.0
    %1242 = vmatprep.subr.mxu0 0.0
    %1243 = vmatpush2.msra.mxu0 0.0
    %1244 = vmatprep.subr.mxu0 0.0
    %1245 = vmatpush2.msra.mxu0 0.0
    %1246 = vmatprep.subr.mxu0 0.0
    %1247 = vmatpush2.msra.mxu0 0.0
    %1248 = vmatprep.subr.mxu0 0.0
    %1249 = vmatpush2.msra.mxu0 0.0
    %1250 = vmatprep.subr.mxu0 0.0
    %1251 = vmatpush2.msra.mxu0 0.0
    %1252 = vmatprep.subr.mxu0 0.0
    %1253 = vmatpush2.msra.mxu0 0.0
    %1254 = vmatprep.subr.mxu0 0.0
    %1255 = vmatpush2.msra.mxu0 0.0
    %1256 = vmatprep.mubr.f32.mxu0 0.0
    %1257 = vmatmul.mubr.f32.gmra.mxu0 %v1188
    %v1258 = vpop.f32.mrf.mxu0
    %v1259 = vadd.f32 0.0, %v1258
    %v1260 = vpop.f32.mrf.mxu0
    %1261 = vmatprep.mubr.f32.mxu0 0.0
    %1262 = vmatmul.mubr.f32.gmra.mxu0 %v1189
    %v1263 = vpop.f32.mrf.mxu0
    %v1264 = vadd.f32 0.0, %v1263
    %v1265 = vpop.f32.mrf.mxu0
    %1266 = vdwg.mxu0
    %1267 = vmatprep.subr.mxu0 0.0
    %1268 = vmatpush1.msra.mxu0 %v784
    %1269 = vmatprep.subr.mxu0 0.0
    %1270 = vmatpush1.msra.mxu0 %v783
    %1271 = vmatprep.subr.mxu0 0.0
    %1272 = vmatpush1.msra.mxu0 %v782
    %1273 = vmatprep.subr.mxu0 0.0
    %1274 = vmatpush1.msra.mxu0 %v781
    %1275 = vmatprep.subr.mxu0 0.0
    %1276 = vmatpush1.msra.mxu0 %v780
    %1277 = vmatprep.subr.mxu0 0.0
    %1278 = vmatpush1.msra.mxu0 %v779
    %1279 = vmatprep.subr.mxu0 0.0
    %1280 = vmatpush1.msra.mxu0 %v778
    %1281 = vmatprep.subr.mxu0 0.0
    %1282 = vmatpush1.msra.mxu0 %v777
    %1283 = vmatprep.subr.mxu0 0.0
    %1284 = vmatpush1.msra.mxu0 %v776
    %1285 = vmatprep.subr.mxu0 0.0
    %1286 = vmatpush1.msra.mxu0 %v775
    %1287 = vmatprep.subr.mxu0 0.0
    %1288 = vmatpush1.msra.mxu0 %v774
    %1289 = vmatprep.subr.mxu0 0.0
    %1290 = vmatpush1.msra.mxu0 %v773
    %1291 = vmatprep.subr.mxu0 0.0
    %1292 = vmatpush1.msra.mxu0 %v772
    %1293 = vmatprep.subr.mxu0 0.0
    %1294 = vmatpush1.msra.mxu0 %v771
    %1295 = vmatprep.subr.mxu0 0.0
    %1296 = vmatpush1.msra.mxu0 %v770
    %1297 = vmatprep.subr.mxu0 0.0
    %1298 = vmatpush1.msra.mxu0 %v769
    %1299 = vmatprep.subr.mxu0 0.0
    %1300 = vmatpush2.msra.mxu0 0.0
    %1301 = vmatprep.subr.mxu0 0.0
    %1302 = vmatpush2.msra.mxu0 0.0
    %1303 = vmatprep.subr.mxu0 0.0
    %1304 = vmatpush2.msra.mxu0 0.0
    %1305 = vmatprep.subr.mxu0 0.0
    %1306 = vmatpush2.msra.mxu0 0.0
    %1307 = vmatprep.subr.mxu0 0.0
    %1308 = vmatpush2.msra.mxu0 0.0
    %1309 = vmatprep.subr.mxu0 0.0
    %1310 = vmatpush2.msra.mxu0 0.0
    %1311 = vmatprep.subr.mxu0 0.0
    %1312 = vmatpush2.msra.mxu0 0.0
    %1313 = vmatprep.subr.mxu0 0.0
    %1314 = vmatpush2.msra.mxu0 0.0
    %1315 = vmatprep.subr.mxu0 0.0
    %1316 = vmatpush2.msra.mxu0 0.0
    %1317 = vmatprep.subr.mxu0 0.0
    %1318 = vmatpush2.msra.mxu0 0.0
    %1319 = vmatprep.subr.mxu0 0.0
    %1320 = vmatpush2.msra.mxu0 0.0
    %1321 = vmatprep.subr.mxu0 0.0
    %1322 = vmatpush2.msra.mxu0 0.0
    %1323 = vmatprep.subr.mxu0 0.0
    %1324 = vmatpush2.msra.mxu0 0.0
    %1325 = vmatprep.subr.mxu0 0.0
    %1326 = vmatpush2.msra.mxu0 0.0
    %1327 = vmatprep.subr.mxu0 0.0
    %1328 = vmatpush2.msra.mxu0 0.0
    %1329 = vmatprep.subr.mxu0 0.0
    %1330 = vmatpush2.msra.mxu0 0.0
    %1331 = vmatprep.mubr.f32.mxu0 0.0
    %1332 = vmatmul.mubr.f32.gmra.mxu0 %v1190
    %v1333 = vpop.f32.mrf.mxu0
    %v1334 = vadd.f32 0.0, %v1333
    %v1335 = vpop.f32.mrf.mxu0
    %1336 = vmatprep.mubr.f32.mxu0 0.0
    %1337 = vmatmul.mubr.f32.gmra.mxu0 %v1191
    %v1338 = vpop.f32.mrf.mxu0
    %v1339 = vadd.f32 0.0, %v1338
    %v1340 = vpop.f32.mrf.mxu0
    %1341 = vdwg.mxu0
    %1342 = vxpose.xlu0.b32.start [1/16] %v1259, 128
    %1343 = vxpose.xlu0.b32.cont [2/16] %v1264, 128
    %1344 = vxpose.xlu0.b32.cont [3/16] 0.0, 128
    %1345 = vxpose.xlu0.b32.cont [4/16] 0.0, 128
    %1346 = vxpose.xlu0.b32.cont [5/16] 0.0, 128
    %1347 = vxpose.xlu0.b32.cont [6/16] 0.0, 128
    %1348 = vxpose.xlu0.b32.cont [7/16] 0.0, 128
    %1349 = vxpose.xlu0.b32.cont [8/16] 0.0, 128
    %1350 = vxpose.xlu0.b32.cont [9/16] 0.0, 128
    %1351 = vxpose.xlu0.b32.cont [10/16] 0.0, 128
    %1352 = vxpose.xlu0.b32.cont [11/16] 0.0, 128
    %1353 = vxpose.xlu0.b32.cont [12/16] 0.0, 128
    %1354 = vxpose.xlu0.b32.cont [13/16] 0.0, 128
    %1355 = vxpose.xlu0.b32.cont [14/16] 0.0, 128
    %1356 = vxpose.xlu0.b32.cont [15/16] 0.0, 128
    %1357 = vxpose.xlu0.b32.end [16/16] 0.0, 128
    %v1358 = vpop.trf.xlu0
    %v1359 = vpop.trf.xlu0
    %v1360 = vpop.trf.xlu0
    %v1361 = vpop.trf.xlu0
    %v1362 = vpop.trf.xlu0
    %v1363 = vpop.trf.xlu0
    %v1364 = vpop.trf.xlu0
    %v1365 = vpop.trf.xlu0
    %v1366 = vpop.trf.xlu0
    %v1367 = vpop.trf.xlu0
    %v1368 = vpop.trf.xlu0
    %v1369 = vpop.trf.xlu0
    %v1370 = vpop.trf.xlu0
    %v1371 = vpop.trf.xlu0
    %v1372 = vpop.trf.xlu0
    %v1373 = vpop.trf.xlu0
    %1374 = vxpose.xlu0.b32.start [1/16] %v1334, 128
    %1375 = vxpose.xlu0.b32.cont [2/16] %v1339, 128
    %1376 = vxpose.xlu0.b32.cont [3/16] 0.0, 128
    %1377 = vxpose.xlu0.b32.cont [4/16] 0.0, 128
    %1378 = vxpose.xlu0.b32.cont [5/16] 0.0, 128
    %1379 = vxpose.xlu0.b32.cont [6/16] 0.0, 128
    %1380 = vxpose.xlu0.b32.cont [7/16] 0.0, 128
    %1381 = vxpose.xlu0.b32.cont [8/16] 0.0, 128
    %1382 = vxpose.xlu0.b32.cont [9/16] 0.0, 128
    %1383 = vxpose.xlu0.b32.cont [10/16] 0.0, 128
    %1384 = vxpose.xlu0.b32.cont [11/16] 0.0, 128
    %1385 = vxpose.xlu0.b32.cont [12/16] 0.0, 128
    %1386 = vxpose.xlu0.b32.cont [13/16] 0.0, 128
    %1387 = vxpose.xlu0.b32.cont [14/16] 0.0, 128
    %1388 = vxpose.xlu0.b32.cont [15/16] 0.0, 128
    %1389 = vxpose.xlu0.b32.end [16/16] 0.0, 128
    %v1390 = vpop.trf.xlu0
    %v1391 = vpop.trf.xlu0
    %v1392 = vpop.trf.xlu0
    %v1393 = vpop.trf.xlu0
    %v1394 = vpop.trf.xlu0
    %v1395 = vpop.trf.xlu0
    %v1396 = vpop.trf.xlu0
    %v1397 = vpop.trf.xlu0
    %v1398 = vpop.trf.xlu0
    %v1399 = vpop.trf.xlu0
    %v1400 = vpop.trf.xlu0
    %v1401 = vpop.trf.xlu0
    %v1402 = vpop.trf.xlu0
    %v1403 = vpop.trf.xlu0
    %v1404 = vpop.trf.xlu0
    %v1405 = vpop.trf.xlu0
    %vm1406 = vcmask 130048
    %1407 = vst.msk [vmem:[%s6] sm:$0xff] %vm1406, %v1358
    %1408 = vst.msk [vmem:[%s6 + $0x8] sm:$0xff] %vm1406, %v1359
    %1409 = vst.msk [vmem:[%s6 + $0x10] sm:$0xff] %vm1406, %v1360
    %1410 = vst.msk [vmem:[%s6 + $0x18] sm:$0xff] %vm1406, %v1361
    %1411 = vst.msk [vmem:[%s6 + $0x20] sm:$0xff] %vm1406, %v1362
    %1412 = vst.msk [vmem:[%s6 + $0x28] sm:$0xff] %vm1406, %v1363
    %1413 = vst.msk [vmem:[%s6 + $0x30] sm:$0xff] %vm1406, %v1364
    %1414 = vst.msk [vmem:[%s6 + $0x38] sm:$0xff] %vm1406, %v1365
    %1415 = vst.msk [vmem:[%s6 + $0x40] sm:$0xff] %vm1406, %v1390
    %1416 = vst.msk [vmem:[%s6 + $0x48] sm:$0xff] %vm1406, %v1391
    %1417 = vst.msk [vmem:[%s6 + $0x50] sm:$0xff] %vm1406, %v1392
    %1418 = vst.msk [vmem:[%s6 + $0x58] sm:$0xff] %vm1406, %v1393
    %1419 = vst.msk [vmem:[%s6 + $0x60] sm:$0xff] %vm1406, %v1394
    %1420 = vst.msk [vmem:[%s6 + $0x68] sm:$0xff] %vm1406, %v1395
    %1421 = vst.msk [vmem:[%s6 + $0x70] sm:$0xff] %vm1406, %v1396
    %1422 = vst.msk [vmem:[%s6 + $0x78] sm:$0xff] %vm1406, %v1397
    // Predicated region
    $region30: #{self_transformer_fwd.1} parent=1 // pred_check
      _
    $region31: #{self_transformer_fwd.1} parent=1 // pred_check_branch
      %1424 = sbr.rel (0) target = $region33
    $region32: #{self_transformer_fwd.1} parent=1 // pred_region
      _
    $region33: #{self_transformer_fwd.1} parent=1 // pred_fallthru
      _
    // Predicated region
    $region34: #{self_transformer_fwd.1} parent=1 // pred_check
      _
    $region35: #{self_transformer_fwd.1} parent=1 // pred_check_branch
      %1426 = sbr.rel (0) target = $region37
    $region36: #{self_transformer_fwd.1} parent=1 // pred_region
      _
    $region37: #{self_transformer_fwd.1} parent=1 // pred_fallthru
      _
    %1427 = vsyncpa [#allocation3], 1

</llo_original>
